<compile_context>
chip_gen: v6e
topology: v6e:2x2x1
jax: 0.10.0
libtpu: 0.0.40
codegen_flags: <defaults>
</compile_context>

<pallas_src>
import functools
import math

import jax
import jax.numpy as jnp
from jax.experimental import pallas as pl
from jax.experimental.pallas import tpu as pltpu

# Explicit scoped-VMEM budget: above the v5e/v6e defaults (16/32 MiB), safely
# under v7x's 64 MiB physical VMEM.
_VMEM_LIMIT_BYTES = 48 * 1024 * 1024


def _pick_tile(dim, candidates):
    """Largest candidate that evenly divides `dim`, else the full dim.

    The full-dim fallback always satisfies the (8,128) BlockSpec rule ("equal
    to the full array dim"); oversized fallbacks are caught by the explicit
    VMEM-budget checks below instead of silently blowing the scoped limit.
    """
    for c in candidates:
        if dim % c == 0:
            return c
    return dim


def _require_vmem(estimate_bytes, what):
    if estimate_bytes > _VMEM_LIMIT_BYTES:
        raise ValueError(
            f"{what}: estimated VMEM working set "
            f"{estimate_bytes / 2**20:.1f} MiB exceeds the "
            f"{_VMEM_LIMIT_BYTES / 2**20:.0f} MiB budget; pad the offending "
            "dimension to a 128/256 multiple or pass smaller tiles.")


# ----------------------------------------------------------------------------
# Tiled matmul kernel (Q / fused KV / output projections)
# ----------------------------------------------------------------------------

def _matmul_kernel(x_ref, w_ref, o_ref, acc_ref):
    @pl.when(pl.program_id(2) == 0)
    def _():
        acc_ref[...] = jnp.zeros_like(acc_ref)

    acc_ref[...] += jnp.dot(x_ref[...], w_ref[...],
                            preferred_element_type=jnp.float32)

    @pl.when(pl.program_id(2) == pl.num_programs(2) - 1)
    def _():
        o_ref[...] = acc_ref[...].astype(o_ref.dtype)


def pallas_matmul(x, w, out_dtype=jnp.float32):
    """x: (M, K), w: (K, N) -> (M, N) with f32 accumulation on the MXU."""
    M, K = x.shape
    K2, N = w.shape
    assert K == K2
    in_item = x.dtype.itemsize
    out_item = jnp.dtype(out_dtype).itemsize
    tm = _pick_tile(M, (512, 256, 128, 64, 32, 16, 8))
    tn = _pick_tile(N, (512, 256, 128))
    tk = _pick_tile(K, (512, 256, 128))
    _require_vmem(2 * (tm * tk + tk * tn) * in_item
                  + 2 * tm * tn * out_item + tm * tn * 4, "pallas_matmul")
    grid = (M // tm, N // tn, K // tk)
    return pl.pallas_call(
        _matmul_kernel,
        out_shape=jax.ShapeDtypeStruct((M, N), out_dtype),
        grid_spec=pltpu.PrefetchScalarGridSpec(
            num_scalar_prefetch=0,
            grid=grid,
            in_specs=[
                pl.BlockSpec((tm, tk), lambda i, j, k: (i, k)),
                pl.BlockSpec((tk, tn), lambda i, j, k: (k, j)),
            ],
            out_specs=pl.BlockSpec((tm, tn), lambda i, j, k: (i, j)),
            scratch_shapes=[pltpu.VMEM((tm, tn), jnp.float32)],
        ),
        compiler_params=pltpu.CompilerParams(
            dimension_semantics=("parallel", "parallel", "arbitrary"),
            vmem_limit_bytes=_VMEM_LIMIT_BYTES),
    )(x, w)


# ----------------------------------------------------------------------------
# Flash-style attention kernel: grid (batch, q-tiles, s-blocks), heads batched.
# ----------------------------------------------------------------------------

def _flash_attention_kernel(q_ref, kv_ref, cb_ref, o_ref,
                            qb_sc, m_sc, l_sc, acc_sc, *, num_heads):
    # q_ref:  (1, tq, h, eh)   head-split query block (one batch element)
    # kv_ref: (1, ts, 2h, eh)  fused KV block (heads 0..h-1 = K, h..2h-1 = V)
    # cb_ref: (1, h, eh)       query content bias (stays VMEM-resident)
    # o_ref:  (1, tq, e)       lane-dense output block, e = h*eh
    si = pl.program_id(2)

    @pl.when(si == 0)
    def _():
        # Once per (batch, q-tile): head-major Q with the content bias folded
        # in ((q + cb) @ k^T == q @ k^T + cb @ k^T, cb constant over tq).
        q = jnp.transpose(q_ref[0], (1, 0, 2))                   # (h, tq, eh)
        cb = cb_ref[0][:, None, :]                                # (h, 1, eh)
        qb = q.astype(jnp.float32) + cb.astype(jnp.float32)      # f32 VPU add (v5e-safe)
        qb_sc[...] = qb.astype(qb_sc.dtype)
        m_sc[...] = jnp.full(m_sc.shape, -jnp.inf, m_sc.dtype)
        l_sc[...] = jnp.zeros(l_sc.shape, l_sc.dtype)
        acc_sc[...] = jnp.zeros(acc_sc.shape, acc_sc.dtype)

    kvh = jnp.transpose(kv_ref[0], (1, 0, 2))                    # (2h, ts, eh)
    k = kvh[:num_heads]                                           # (h, ts, eh)
    v = kvh[num_heads:]                                           # (h, ts, eh)

    # All heads in one batched MXU einsum (no per-head Python unroll).
    logits = jnp.einsum("hqd,hkd->hqk", qb_sc[...], k,
                        preferred_element_type=jnp.float32)       # (h, tq, ts) f32

    # Online softmax update; elementwise math in f32 on every generation.
    m_prev = m_sc[...]
    m_new = jnp.maximum(m_prev, jnp.max(logits, axis=-1, keepdims=True))
    alpha = jnp.exp(m_prev - m_new)
    p = jnp.exp(logits - m_new)
    l_sc[...] = alpha * l_sc[...] + jnp.sum(p, axis=-1, keepdims=True)
    acc_sc[...] = alpha * acc_sc[...] + jnp.einsum(
        "hqk,hkd->hqd", p.astype(v.dtype), v,
        preferred_element_type=jnp.float32)
    m_sc[...] = m_new

    @pl.when(si == pl.num_programs(2) - 1)
    def _():
        # Exact divide for parity with torch.softmax; pl.reciprocal(l, approx=True)
        # is the inference-mode EUP alternative.
        out = acc_sc[...] / l_sc[...]                             # (h, tq, eh) f32
        eh = out.shape[-1]
        # Per-head static-offset stores into the lane-dense (tq, e) block; no
        # head-merge relayout and no jnp.concatenate pass.
        for hi in range(num_heads):
            o_ref[0, :, hi * eh:(hi + 1) * eh] = out[hi].astype(o_ref.dtype)


def pallas_flash_attention(q4, kv4, cb3, *, num_heads, tq=None, ts=None,
                           out_dtype=None):
    """q4: (n, t, h, eh), kv4: (n, s, 2h, eh), cb3: (1, h, eh) -> (n, t, h*eh)."""
    n, t, h, eh = q4.shape
    s = kv4.shape[1]
    assert h == num_heads and kv4.shape == (n, s, 2 * h, eh)
    e = h * eh
    if tq is None:
        tq = _pick_tile(t, (256, 128, 64, 32, 16, 8))
    if ts is None:
        ts = _pick_tile(s, (256, 128, 64, 32, 16, 8))
    assert t % tq == 0 and s % ts == 0
    if out_dtype is None:
        out_dtype = q4.dtype

    in_item = q4.dtype.itemsize
    out_item = jnp.dtype(out_dtype).itemsize
    est = (2 * (tq * e + ts * 2 * e) * in_item     # q + kv blocks, double-buffered
           + 2 * tq * e * out_item                 # output block, double-buffered
           + h * tq * eh * in_item                 # bias-folded Q scratch
           + (2 * h * tq + h * tq * eh) * 4        # m / l / acc scratch (f32)
           + 2 * h * tq * ts * 4)                  # logits + p temporaries (f32)
    _require_vmem(est, "pallas_flash_attention")

    kernel = functools.partial(_flash_attention_kernel, num_heads=num_heads)
    grid = (n, t // tq, s // ts)
    return pl.pallas_call(
        kernel,
        out_shape=jax.ShapeDtypeStruct((n, t, e), out_dtype),
        grid_spec=pltpu.PrefetchScalarGridSpec(
            num_scalar_prefetch=0,
            grid=grid,
            in_specs=[
                pl.BlockSpec((1, tq, h, eh), lambda b, qi, si: (b, qi, 0, 0)),
                pl.BlockSpec((1, ts, 2 * h, eh), lambda b, qi, si: (b, si, 0, 0)),
                pl.BlockSpec((1, h, eh), lambda b, qi, si: (0, 0, 0)),
            ],
            out_specs=pl.BlockSpec((1, tq, e), lambda b, qi, si: (b, qi, 0)),
            scratch_shapes=[
                pltpu.VMEM((h, tq, eh), q4.dtype),     # bias-folded head-major Q
                pltpu.VMEM((h, tq, 1), jnp.float32),   # running max
                pltpu.VMEM((h, tq, 1), jnp.float32),   # running denominator
                pltpu.VMEM((h, tq, eh), jnp.float32),  # running numerator
            ],
        ),
        compiler_params=pltpu.CompilerParams(
            dimension_semantics=("parallel", "parallel", "arbitrary"),
            vmem_limit_bytes=_VMEM_LIMIT_BYTES),
    )(q4, kv4, cb3)


# ----------------------------------------------------------------------------
# Module forward (glue: layout + weight fusion; all math in Pallas kernels)
# ----------------------------------------------------------------------------

def relative_mha_forward(params, query_source, key_source, value_source,
                         num_heads, mxu_dtype=jnp.float32, tq=None, ts=None):
    """Mirrors RelativeMultiheadAttention.forward (relative_dim=0, no mask).

    mxu_dtype=jnp.bfloat16 keeps MXU operands / inter-kernel intermediates in
    bf16 (v6e/v7x default recommendation) with f32 accumulation and f32 softmax.
    """
    same_kv = value_source is None or value_source is key_source
    if value_source is None:
        value_source = key_source
    t, n, e = query_source.shape
    s = key_source.shape[0]
    assert e % num_heads == 0
    h = num_heads
    eh = e // h

    wq_t = params["wq"].T.astype(mxu_dtype)
    wk_t = params["wk"].T.astype(mxu_dtype)
    wv_t = params["wv"].T.astype(mxu_dtype)
    wo_t = params["wo"].T.astype(mxu_dtype)
    cb3 = params["query_content_bias"].astype(mxu_dtype).reshape(1, h, eh)

    # Batch-major sources so the attention kernel slices per batch on a leading
    # dim with valid (8,128)-friendly blocks.  These (and the single final
    # transpose) are the only HBM layout passes left; transposing after the
    # projection would move strictly more bytes with fused K/V.
    xq = jnp.transpose(query_source.astype(mxu_dtype), (1, 0, 2)).reshape(n * t, e)
    xk = jnp.transpose(key_source.astype(mxu_dtype), (1, 0, 2)).reshape(n * s, e)

    q2d = pallas_matmul(xq, wq_t, out_dtype=mxu_dtype)               # (n*t, e)

    if same_kv:
        # Fused K/V projection: one launch, lane-dense (n*s, 2e) output that
        # reshapes for FREE into the attention kernel's fused KV layout.
        wkv_t = jnp.concatenate([wk_t, wv_t], axis=1)                # (e, 2e)
        kv2d = pallas_matmul(xk, wkv_t, out_dtype=mxu_dtype)         # (n*s, 2e)
        kv4 = kv2d.reshape(n, s, 2 * h, eh)
    else:
        xv = jnp.transpose(value_source.astype(mxu_dtype), (1, 0, 2)).reshape(n * s, e)
        k2d = pallas_matmul(xk, wk_t, out_dtype=mxu_dtype)
        v2d = pallas_matmul(xv, wv_t, out_dtype=mxu_dtype)
        kv4 = jnp.concatenate([k2d, v2d], axis=-1).reshape(n, s, 2 * h, eh)

    q4 = q2d.reshape(n, t, h, eh)                                    # free reshape

    attn = pallas_flash_attention(q4, kv4, cb3, num_heads=h,
                                  tq=tq, ts=ts)                      # (n, t, e)

    out = pallas_matmul(attn.reshape(n * t, e), wo_t, out_dtype=jnp.float32)
    return jnp.transpose(out.reshape(n, t, e), (1, 0, 2))            # (t, n, e)


# ----------------------------------------------------------------------------
# Deterministic parameter initialization (matches the module's __init__ shapes)
# ----------------------------------------------------------------------------

def init_params(key, feature_dim):
    def xavier_uniform(k, shape):
        fan_out, fan_in = shape
        a = math.sqrt(6.0 / (fan_in + fan_out))
        return jax.random.uniform(k, shape, jnp.float32, minval=-a, maxval=a)

    ks = jax.random.split(key, 6)
    e = feature_dim
    return {
        "wq": xavier_uniform(ks[0], (e, e)),
        "wk": xavier_uniform(ks[1], (e, e)),
        "wv": xavier_uniform(ks[2], (e, e)),
        "wo": xavier_uniform(ks[3], (e, e)),
        # register_buffer('query_content_bias', torch.rand(1, feature_dim))
        "query_content_bias": jax.random.uniform(ks[4], (1, e), jnp.float32),
        # query_location_bias exists but is unused when relative_dim == 0
        "query_location_bias": jax.random.uniform(ks[5], (1, e), jnp.float32),
    }


# ----------------------------------------------------------------------------
# Pure-JAX reference (mirrors the PyTorch forward, exact f32 matmuls)
# ----------------------------------------------------------------------------

def reference_forward(params, query_source, key_source, value_source, num_heads):
    P = jax.lax.Precision.HIGHEST   # exact f32 (avoid TPU default bf16 passes)
    if value_source is None:
        value_source = key_source
    t, n, e = query_source.shape
    s = key_source.shape[0]
    h = num_heads
    eh = e // h
    wq, wk, wv, wo = params["wq"], params["wk"], params["wv"], params["wo"]
    qcb = params["query_content_bias"]

    q = jnp.matmul(query_source.reshape(t * n, e), wq.T, precision=P).reshape(t, n, h, eh)
    k = jnp.matmul(key_source.reshape(s * n, e), wk.T, precision=P).reshape(s, n, h, eh)
    v = jnp.matmul(value_source.reshape(s * n, e), wv.T, precision=P).reshape(s, n, h, eh)

    q = q.transpose(1, 2, 0, 3).reshape(n * h, t, eh)
    k = k.transpose(1, 2, 3, 0).reshape(n * h, eh, s)
    v = v.transpose(1, 2, 0, 3).reshape(n * h, s, eh)

    content_logits = jnp.einsum("bte,bes->bts", q, k, precision=P)
    cb = jnp.tile(qcb, (n, 1)).reshape(n * h, 1, eh)
    content_bias = jnp.einsum("bxe,bes->bxs", cb, k, precision=P)
    logits = content_logits + content_bias
    weights = jax.nn.softmax(logits, axis=2)
    weighted_value = jnp.einsum("bts,bse->bte", weights, v, precision=P)
    weighted_value = (
        weighted_value.reshape(n, h, t, eh).transpose(2, 0, 1, 3).reshape(t * n, e))
    return jnp.matmul(weighted_value, wo.T, precision=P).reshape(t, n, e)


# ----------------------------------------------------------------------------
# Main
# ----------------------------------------------------------------------------

if __name__ == "__main__":
    feature_dim = 32
    num_heads = 4
    t, s, n = 16, 24, 2   # tq=8, ts=8 -> 2 q-tiles x 3 s-blocks exercises the
                          # parallel q axis and the online-softmax recurrence.

    root = jax.random.PRNGKey(0)
    k_params, k_q, k_k = jax.random.split(root, 3)

    params = init_params(k_params, feature_dim)
    # Mild input scale keeps the (unscaled, as in the module) logits small so
    # the check is insensitive to the TPU's default bf16 matmul operand passes.
    query_source = 0.5 * jax.random.normal(k_q, (t, n, feature_dim), jnp.float32)
    key_source = 0.5 * jax.random.normal(k_k, (s, n, feature_dim), jnp.float32)
    # value_source=None -> module uses key_source (canonical usage; exercises
    # the fused K/V projection path).

    ref = reference_forward(params, query_source, key_source, None, num_heads)

    def rel_l2(a, b):
        return float(jnp.linalg.norm((a - b).ravel())
                     / (jnp.linalg.norm(b.ravel()) + 1e-12))

    # f32 MXU-operand path.  Tolerance covers the worst case where the in-kernel
    # f32 matmuls lower to bf16-operand MXU passes (XLA/Mosaic default).
    fwd = jax.jit(functools.partial(relative_mha_forward, num_heads=num_heads,
                                    mxu_dtype=jnp.float32, tq=8, ts=8))
    out = jax.block_until_ready(fwd(params, query_source, key_source, None))
    assert out.shape == (t, n, feature_dim)
    err_f32 = rel_l2(out, ref)
    assert err_f32 < 2e-2, f"f32 path mismatch vs reference: rel_l2={err_f32}"

    # bf16 MXU-operand path (v6e/v7x recommendation): f32 accumulation + softmax.
    fwd_bf16 = jax.jit(functools.partial(relative_mha_forward, num_heads=num_heads,
                                         mxu_dtype=jnp.bfloat16, tq=8, ts=8))
    out_bf16 = jax.block_until_ready(fwd_bf16(params, query_source, key_source, None))
    assert out_bf16.shape == (t, n, feature_dim)
    err_bf16 = rel_l2(out_bf16.astype(jnp.float32), ref)
    assert err_bf16 < 8e-2, f"bf16 path mismatch vs reference: rel_l2={err_bf16}"

    print("KERNEL_OK")
</pallas_src>

<mosaic_0001>
module attributes {stable_mosaic.version = 11 : i64} {
  func.func @_matmul_kernel(%arg0: i32, %arg1: i32, %arg2: i32, %arg3: memref<16x32xf32, #tpu.memory_space<vmem>>, %arg4: memref<32x64xf32, #tpu.memory_space<vmem>>, %arg5: memref<16x64xf32, #tpu.memory_space<vmem>>, %arg6: memref<16x64xf32, #tpu.memory_space<vmem>>) attributes {dimension_semantics = [#tpu.dimension_semantics<parallel>, #tpu.dimension_semantics<parallel>, #tpu.dimension_semantics<arbitrary>], iteration_bounds = array<i64: 3, 1, 1>, scalar_prefetch = 0 : i64, scratch_operands = 1 : i64, tpu.core_type = #tpu.core_type<tc>, window_params = [{transform_indices = @transform_0, window_bounds = array<i64: 16, 32>}, {transform_indices = @transform_1, window_bounds = array<i64: 32, 64>}, {transform_indices = @transform_2, window_bounds = array<i64: 16, 64>}]} {
    %c0_i32 = arith.constant 0 : i32
    %0 = arith.cmpi eq, %arg2, %c0_i32 : i32
    %1 = arith.extui %0 : i1 to i32
    %c0_i32_0 = arith.constant 0 : i32
    %2 = arith.cmpi ne, %1, %c0_i32_0 : i32
    scf.if %2 {
      %cst_10 = arith.constant 0.000000e+00 : f32
      %12 = vector.broadcast %cst_10 : f32 to vector<16x64xf32>
      %c0_11 = arith.constant 0 : index
      %c0_12 = arith.constant 0 : index
      %13 = vector.load %arg6[%c0_11, %c0_12] : memref<16x64xf32, #tpu.memory_space<vmem>>, vector<16x64xf32>
      tpu.vector_store %arg6[%c0_11, %c0_12], %12 {strides = array<i32>} : memref<16x64xf32, #tpu.memory_space<vmem>>, vector<16x64xf32>,
    } else {
    }
    %c0 = arith.constant 0 : index
    %c0_1 = arith.constant 0 : index
    %3 = vector.load %arg6[%c0, %c0_1] : memref<16x64xf32, #tpu.memory_space<vmem>>, vector<16x64xf32>
    %c0_2 = arith.constant 0 : index
    %c0_3 = arith.constant 0 : index
    %4 = vector.load %arg3[%c0_2, %c0_3] : memref<16x32xf32, #tpu.memory_space<vmem>>, vector<16x32xf32>
    %c0_4 = arith.constant 0 : index
    %c0_5 = arith.constant 0 : index
    %5 = vector.load %arg4[%c0_4, %c0_5] : memref<32x64xf32, #tpu.memory_space<vmem>>, vector<32x64xf32>
    %cst = arith.constant dense<0.000000e+00> : vector<16x64xf32>
    %6 = tpu.matmul %4, %5, %cst {dimension_numbers = #tpu.dot_dimension_numbers<[1], [0], [0], [1], [0, 0, 1, 1], [], []>} : vector<16x32xf32>, vector<32x64xf32>, vector<16x64xf32> -> vector<16x64xf32>
    %7 = arith.addf %3, %6 : vector<16x64xf32>
    %c0_6 = arith.constant 0 : index
    %c0_7 = arith.constant 0 : index
    %8 = vector.load %arg6[%c0_6, %c0_7] : memref<16x64xf32, #tpu.memory_space<vmem>>, vector<16x64xf32>
    tpu.vector_store %arg6[%c0_6, %c0_7], %7 {strides = array<i32>} : memref<16x64xf32, #tpu.memory_space<vmem>>, vector<16x64xf32>,
    %c0_i32_8 = arith.constant 0 : i32
    %9 = arith.cmpi eq, %arg2, %c0_i32_8 : i32
    %10 = arith.extui %9 : i1 to i32
    %c0_i32_9 = arith.constant 0 : i32
    %11 = arith.cmpi ne, %10, %c0_i32_9 : i32
    scf.if %11 {
      %c0_10 = arith.constant 0 : index
      %c0_11 = arith.constant 0 : index
      %12 = vector.load %arg6[%c0_10, %c0_11] : memref<16x64xf32, #tpu.memory_space<vmem>>, vector<16x64xf32>
      %c0_12 = arith.constant 0 : index
      %c0_13 = arith.constant 0 : index
      %13 = vector.load %arg5[%c0_12, %c0_13] : memref<16x64xf32, #tpu.memory_space<vmem>>, vector<16x64xf32>
      tpu.vector_store %arg5[%c0_12, %c0_13], %12 {strides = array<i32>} : memref<16x64xf32, #tpu.memory_space<vmem>>, vector<16x64xf32>,
    } else {
    }
    return
  }
  func.func @transform_0(%arg0: i32, %arg1: i32, %arg2: i32) -> (i32, i32) {
    %c0_i32 = arith.constant 0 : i32
    return %arg0, %arg2 : i32, i32
  }
  func.func @transform_1(%arg0: i32, %arg1: i32, %arg2: i32) -> (i32, i32) {
    %c0_i32 = arith.constant 0 : i32
    return %arg2, %arg1 : i32, i32
  }
  func.func @transform_2(%arg0: i32, %arg1: i32, %arg2: i32) -> (i32, i32) {
    %c0_i32 = arith.constant 0 : i32
    return %arg0, %arg1 : i32, i32
  }
}

module attributes {stable_mosaic.version = 11 : i64} {
  func.func @_matmul_kernel(%arg0: i32, %arg1: i32, %arg2: i32, %arg3: memref<32x32xf32, #tpu.memory_space<vmem>>, %arg4: memref<32x32xf32, #tpu.memory_space<vmem>>, %arg5: memref<32x32xf32, #tpu.memory_space<vmem>>, %arg6: memref<32x32xf32, #tpu.memory_space<vmem>>) attributes {dimension_semantics = [#tpu.dimension_semantics<parallel>, #tpu.dimension_semantics<parallel>, #tpu.dimension_semantics<arbitrary>], iteration_bounds = array<i64: 1, 1, 1>, scalar_prefetch = 0 : i64, scratch_operands = 1 : i64, tpu.core_type = #tpu.core_type<tc>, window_params = [{transform_indices = @transform_0, window_bounds = array<i64: 32, 32>}, {transform_indices = @transform_1, window_bounds = array<i64: 32, 32>}, {transform_indices = @transform_2, window_bounds = array<i64: 32, 32>}]} {
    %c0_i32 = arith.constant 0 : i32
    %0 = arith.cmpi eq, %arg2, %c0_i32 : i32
    %1 = arith.extui %0 : i1 to i32
    %c0_i32_0 = arith.constant 0 : i32
    %2 = arith.cmpi ne, %1, %c0_i32_0 : i32
    scf.if %2 {
      %cst_10 = arith.constant 0.000000e+00 : f32
      %12 = vector.broadcast %cst_10 : f32 to vector<32x32xf32>
      %c0_11 = arith.constant 0 : index
      %c0_12 = arith.constant 0 : index
      %13 = vector.load %arg6[%c0_11, %c0_12] : memref<32x32xf32, #tpu.memory_space<vmem>>, vector<32x32xf32>
      tpu.vector_store %arg6[%c0_11, %c0_12], %12 {strides = array<i32>} : memref<32x32xf32, #tpu.memory_space<vmem>>, vector<32x32xf32>,
    } else {
    }
    %c0 = arith.constant 0 : index
    %c0_1 = arith.constant 0 : index
    %3 = vector.load %arg6[%c0, %c0_1] : memref<32x32xf32, #tpu.memory_space<vmem>>, vector<32x32xf32>
    %c0_2 = arith.constant 0 : index
    %c0_3 = arith.constant 0 : index
    %4 = vector.load %arg3[%c0_2, %c0_3] : memref<32x32xf32, #tpu.memory_space<vmem>>, vector<32x32xf32>
    %c0_4 = arith.constant 0 : index
    %c0_5 = arith.constant 0 : index
    %5 = vector.load %arg4[%c0_4, %c0_5] : memref<32x32xf32, #tpu.memory_space<vmem>>, vector<32x32xf32>
    %cst = arith.constant dense<0.000000e+00> : vector<32x32xf32>
    %6 = tpu.matmul %4, %5, %cst {dimension_numbers = #tpu.dot_dimension_numbers<[1], [0], [0], [1], [0, 0, 1, 1], [], []>} : vector<32x32xf32>, vector<32x32xf32>, vector<32x32xf32> -> vector<32x32xf32>
    %7 = arith.addf %3, %6 : vector<32x32xf32>
    %c0_6 = arith.constant 0 : index
    %c0_7 = arith.constant 0 : index
    %8 = vector.load %arg6[%c0_6, %c0_7] : memref<32x32xf32, #tpu.memory_space<vmem>>, vector<32x32xf32>
    tpu.vector_store %arg6[%c0_6, %c0_7], %7 {strides = array<i32>} : memref<32x32xf32, #tpu.memory_space<vmem>>, vector<32x32xf32>,
    %c0_i32_8 = arith.constant 0 : i32
    %9 = arith.cmpi eq, %arg2, %c0_i32_8 : i32
    %10 = arith.extui %9 : i1 to i32
    %c0_i32_9 = arith.constant 0 : i32
    %11 = arith.cmpi ne, %10, %c0_i32_9 : i32
    scf.if %11 {
      %c0_10 = arith.constant 0 : index
      %c0_11 = arith.constant 0 : index
      %12 = vector.load %arg6[%c0_10, %c0_11] : memref<32x32xf32, #tpu.memory_space<vmem>>, vector<32x32xf32>
      %c0_12 = arith.constant 0 : index
      %c0_13 = arith.constant 0 : index
      %13 = vector.load %arg5[%c0_12, %c0_13] : memref<32x32xf32, #tpu.memory_space<vmem>>, vector<32x32xf32>
      tpu.vector_store %arg5[%c0_12, %c0_13], %12 {strides = array<i32>} : memref<32x32xf32, #tpu.memory_space<vmem>>, vector<32x32xf32>,
    } else {
    }
    return
  }
  func.func @transform_0(%arg0: i32, %arg1: i32, %arg2: i32) -> (i32, i32) {
    %c0_i32 = arith.constant 0 : i32
    return %arg0, %arg2 : i32, i32
  }
  func.func @transform_1(%arg0: i32, %arg1: i32, %arg2: i32) -> (i32, i32) {
    %c0_i32 = arith.constant 0 : i32
    return %arg2, %arg1 : i32, i32
  }
  func.func @transform_2(%arg0: i32, %arg1: i32, %arg2: i32) -> (i32, i32) {
    %c0_i32 = arith.constant 0 : i32
    return %arg0, %arg1 : i32, i32
  }
}

module attributes {stable_mosaic.version = 11 : i64} {
  func.func @_flash_attention_kernel(%arg0: i32, %arg1: i32, %arg2: i32, %arg3: memref<1x8x4x8xf32, #tpu.memory_space<vmem>>, %arg4: memref<1x8x8x8xf32, #tpu.memory_space<vmem>>, %arg5: memref<1x4x8xf32, #tpu.memory_space<vmem>>, %arg6: memref<1x8x32xf32, #tpu.memory_space<vmem>>, %arg7: memref<4x8x8xf32, #tpu.memory_space<vmem>>, %arg8: memref<4x8x1xf32, #tpu.memory_space<vmem>>, %arg9: memref<4x8x1xf32, #tpu.memory_space<vmem>>, %arg10: memref<4x8x8xf32, #tpu.memory_space<vmem>>) attributes {dimension_semantics = [#tpu.dimension_semantics<parallel>, #tpu.dimension_semantics<parallel>, #tpu.dimension_semantics<arbitrary>], iteration_bounds = array<i64: 2, 2, 3>, scalar_prefetch = 0 : i64, scratch_operands = 4 : i64, tpu.core_type = #tpu.core_type<tc>, window_params = [{transform_indices = @transform_0, window_bounds = array<i64: 1, 8, 4, 8>}, {transform_indices = @transform_1, window_bounds = array<i64: 1, 8, 8, 8>}, {pipeline_mode = #tpu.pipeline_mode<synchronous>, transform_indices = @transform_2, window_bounds = array<i64: 1, 4, 8>}, {transform_indices = @transform_3, window_bounds = array<i64: 1, 8, 32>}]} {
    %c0_i32 = arith.constant 0 : i32
    %0 = arith.cmpi eq, %arg2, %c0_i32 : i32
    %1 = arith.extui %0 : i1 to i32
    %c0_i32_0 = arith.constant 0 : i32
    %2 = arith.cmpi ne, %1, %c0_i32_0 : i32
    scf.if %2 {
      %c0_29 = arith.constant 0 : index
      %c0_30 = arith.constant 0 : index
      %c0_31 = arith.constant 0 : index
      %c0_32 = arith.constant 0 : index
      %35 = vector.load %arg3[%c0_29, %c0_30, %c0_31, %c0_32] : memref<1x8x4x8xf32, #tpu.memory_space<vmem>>, vector<1x8x4x8xf32>
      %36 = vector.shape_cast %35 : vector<1x8x4x8xf32> to vector<8x4x8xf32>
      %37 = tpu.transpose %36, [1, 0, 2] : vector<8x4x8xf32> -> vector<4x8x8xf32>
      %c0_33 = arith.constant 0 : index
      %c0_34 = arith.constant 0 : index
      %c0_35 = arith.constant 0 : index
      %38 = vector.load %arg5[%c0_33, %c0_34, %c0_35] : memref<1x4x8xf32, #tpu.memory_space<vmem>>, vector<1x4x8xf32>
      %39 = vector.shape_cast %38 : vector<1x4x8xf32> to vector<4x8xf32>
      %40 = vector.shape_cast %39 : vector<4x8xf32> to vector<4x1x8xf32>
      %41 = vector.broadcast %40 : vector<4x1x8xf32> to vector<4x8x8xf32>
      %42 = arith.addf %37, %41 : vector<4x8x8xf32>
      %c0_36 = arith.constant 0 : index
      %c0_37 = arith.constant 0 : index
      %c0_38 = arith.constant 0 : index
      %43 = vector.load %arg7[%c0_36, %c0_37, %c0_38] : memref<4x8x8xf32, #tpu.memory_space<vmem>>, vector<4x8x8xf32>
      tpu.vector_store %arg7[%c0_36, %c0_37, %c0_38], %42 {strides = array<i32>} : memref<4x8x8xf32, #tpu.memory_space<vmem>>, vector<4x8x8xf32>,
      %cst_39 = arith.constant 0xFF800000 : f32
      %44 = vector.broadcast %cst_39 : f32 to vector<4x8x1xf32>
      %c0_40 = arith.constant 0 : index
      %c0_41 = arith.constant 0 : index
      %c0_42 = arith.constant 0 : index
      %45 = vector.load %arg8[%c0_40, %c0_41, %c0_42] : memref<4x8x1xf32, #tpu.memory_space<vmem>>, vector<4x8x1xf32>
      tpu.vector_store %arg8[%c0_40, %c0_41, %c0_42], %44 {strides = array<i32>} : memref<4x8x1xf32, #tpu.memory_space<vmem>>, vector<4x8x1xf32>,
      %cst_43 = arith.constant 0.000000e+00 : f32
      %46 = vector.broadcast %cst_43 : f32 to vector<4x8x1xf32>
      %c0_44 = arith.constant 0 : index
      %c0_45 = arith.constant 0 : index
      %c0_46 = arith.constant 0 : index
      %47 = vector.load %arg9[%c0_44, %c0_45, %c0_46] : memref<4x8x1xf32, #tpu.memory_space<vmem>>, vector<4x8x1xf32>
      tpu.vector_store %arg9[%c0_44, %c0_45, %c0_46], %46 {strides = array<i32>} : memref<4x8x1xf32, #tpu.memory_space<vmem>>, vector<4x8x1xf32>,
      %cst_47 = arith.constant 0.000000e+00 : f32
      %48 = vector.broadcast %cst_47 : f32 to vector<4x8x8xf32>
      %c0_48 = arith.constant 0 : index
      %c0_49 = arith.constant 0 : index
      %c0_50 = arith.constant 0 : index
      %49 = vector.load %arg10[%c0_48, %c0_49, %c0_50] : memref<4x8x8xf32, #tpu.memory_space<vmem>>, vector<4x8x8xf32>
      tpu.vector_store %arg10[%c0_48, %c0_49, %c0_50], %48 {strides = array<i32>} : memref<4x8x8xf32, #tpu.memory_space<vmem>>, vector<4x8x8xf32>,
    } else {
    }
    %c0 = arith.constant 0 : index
    %c0_1 = arith.constant 0 : index
    %c0_2 = arith.constant 0 : index
    %c0_3 = arith.constant 0 : index
    %3 = vector.load %arg4[%c0, %c0_1, %c0_2, %c0_3] : memref<1x8x8x8xf32, #tpu.memory_space<vmem>>, vector<1x8x8x8xf32>
    %4 = vector.shape_cast %3 : vector<1x8x8x8xf32> to vector<8x8x8xf32>
    %5 = tpu.transpose %4, [1, 0, 2] : vector<8x8x8xf32> -> vector<8x8x8xf32>
    %6 = vector.extract_strided_slice %5 {offsets = [0, 0, 0], sizes = [4, 8, 8], strides = [1, 1, 1]} : vector<8x8x8xf32> to vector<4x8x8xf32>
    %7 = vector.extract_strided_slice %5 {offsets = [4, 0, 0], sizes = [4, 8, 8], strides = [1, 1, 1]} : vector<8x8x8xf32> to vector<4x8x8xf32>
    %c0_4 = arith.constant 0 : index
    %c0_5 = arith.constant 0 : index
    %c0_6 = arith.constant 0 : index
    %8 = vector.load %arg7[%c0_4, %c0_5, %c0_6] : memref<4x8x8xf32, #tpu.memory_space<vmem>>, vector<4x8x8xf32>
    "tpu.trace_start"() <{level = 10 : i32, message = "hqd,hkd->hqk"}> : () -> ()
    %cst = arith.constant dense<0.000000e+00> : vector<4x8x8xf32>
    %9 = tpu.matmul %8, %6, %cst {dimension_numbers = #tpu.dot_dimension_numbers<[2], [2], [1], [1], [0, 0, 0, 1, 1, 1], [0], [0]>} : vector<4x8x8xf32>, vector<4x8x8xf32>, vector<4x8x8xf32> -> vector<4x8x8xf32>
    "tpu.trace_stop"() : () -> ()
    %c0_7 = arith.constant 0 : index
    %c0_8 = arith.constant 0 : index
    %c0_9 = arith.constant 0 : index
    %10 = vector.load %arg8[%c0_7, %c0_8, %c0_9] : memref<4x8x1xf32, #tpu.memory_space<vmem>>, vector<4x8x1xf32>
    %cst_10 = arith.constant dense<0xFF800000> : vector<4x8xf32>
    %11 = vector.multi_reduction <maximumf>, %9, %cst_10 [2] : vector<4x8x8xf32> to vector<4x8xf32>
    %12 = vector.shape_cast %11 : vector<4x8xf32> to vector<4x8x1xf32>
    %13 = arith.maximumf %10, %12 : vector<4x8x1xf32>
    %14 = arith.subf %10, %13 : vector<4x8x1xf32>
    %15 = math.exp %14 : vector<4x8x1xf32>
    %16 = vector.broadcast %13 : vector<4x8x1xf32> to vector<4x8x8xf32>
    %17 = arith.subf %9, %16 : vector<4x8x8xf32>
    %18 = math.exp %17 : vector<4x8x8xf32>
    %c0_11 = arith.constant 0 : index
    %c0_12 = arith.constant 0 : index
    %c0_13 = arith.constant 0 : index
    %19 = vector.load %arg9[%c0_11, %c0_12, %c0_13] : memref<4x8x1xf32, #tpu.memory_space<vmem>>, vector<4x8x1xf32>
    %20 = arith.mulf %15, %19 : vector<4x8x1xf32>
    %cst_14 = arith.constant dense<0.000000e+00> : vector<4x8xf32>
    %21 = vector.multi_reduction <add>, %18, %cst_14 [2] : vector<4x8x8xf32> to vector<4x8xf32>
    %22 = vector.shape_cast %21 : vector<4x8xf32> to vector<4x8x1xf32>
    %23 = arith.addf %20, %22 : vector<4x8x1xf32>
    %c0_15 = arith.constant 0 : index
    %c0_16 = arith.constant 0 : index
    %c0_17 = arith.constant 0 : index
    %24 = vector.load %arg9[%c0_15, %c0_16, %c0_17] : memref<4x8x1xf32, #tpu.memory_space<vmem>>, vector<4x8x1xf32>
    tpu.vector_store %arg9[%c0_15, %c0_16, %c0_17], %23 {strides = array<i32>} : memref<4x8x1xf32, #tpu.memory_space<vmem>>, vector<4x8x1xf32>,
    %c0_18 = arith.constant 0 : index
    %c0_19 = arith.constant 0 : index
    %c0_20 = arith.constant 0 : index
    %25 = vector.load %arg10[%c0_18, %c0_19, %c0_20] : memref<4x8x8xf32, #tpu.memory_space<vmem>>, vector<4x8x8xf32>
    %26 = vector.broadcast %15 : vector<4x8x1xf32> to vector<4x8x8xf32>
    %27 = arith.mulf %26, %25 : vector<4x8x8xf32>
    "tpu.trace_start"() <{level = 10 : i32, message = "hqk,hkd->hqd"}> : () -> ()
    %cst_21 = arith.constant dense<0.000000e+00> : vector<4x8x8xf32>
    %28 = tpu.matmul %18, %7, %cst_21 {dimension_numbers = #tpu.dot_dimension_numbers<[2], [1], [1], [2], [0, 0, 0, 1, 1, 2], [0], [0]>} : vector<4x8x8xf32>, vector<4x8x8xf32>, vector<4x8x8xf32> -> vector<4x8x8xf32>
    "tpu.trace_stop"() : () -> ()
    %29 = arith.addf %27, %28 : vector<4x8x8xf32>
    %c0_22 = arith.constant 0 : index
    %c0_23 = arith.constant 0 : index
    %c0_24 = arith.constant 0 : index
    %30 = vector.load %arg10[%c0_22, %c0_23, %c0_24] : memref<4x8x8xf32, #tpu.memory_space<vmem>>, vector<4x8x8xf32>
    tpu.vector_store %arg10[%c0_22, %c0_23, %c0_24], %29 {strides = array<i32>} : memref<4x8x8xf32, #tpu.memory_space<vmem>>, vector<4x8x8xf32>,
    %c0_25 = arith.constant 0 : index
    %c0_26 = arith.constant 0 : index
    %c0_27 = arith.constant 0 : index
    %31 = vector.load %arg8[%c0_25, %c0_26, %c0_27] : memref<4x8x1xf32, #tpu.memory_space<vmem>>, vector<4x8x1xf32>
    tpu.vector_store %arg8[%c0_25, %c0_26, %c0_27], %13 {strides = array<i32>} : memref<4x8x1xf32, #tpu.memory_space<vmem>>, vector<4x8x1xf32>,
    %c2_i32 = arith.constant 2 : i32
    %32 = arith.cmpi eq, %arg2, %c2_i32 : i32
    %33 = arith.extui %32 : i1 to i32
    %c0_i32_28 = arith.constant 0 : i32
    %34 = arith.cmpi ne, %33, %c0_i32_28 : i32
    scf.if %34 {
      %c0_29 = arith.constant 0 : index
      %c0_30 = arith.constant 0 : index
      %c0_31 = arith.constant 0 : index
      %35 = vector.load %arg10[%c0_29, %c0_30, %c0_31] : memref<4x8x8xf32, #tpu.memory_space<vmem>>, vector<4x8x8xf32>
      %c0_32 = arith.constant 0 : index
      %c0_33 = arith.constant 0 : index
      %c0_34 = arith.constant 0 : index
      %36 = vector.load %arg9[%c0_32, %c0_33, %c0_34] : memref<4x8x1xf32, #tpu.memory_space<vmem>>, vector<4x8x1xf32>
      %37 = vector.broadcast %36 : vector<4x8x1xf32> to vector<4x8x8xf32>
      %38 = arith.divf %35, %37 : vector<4x8x8xf32>
      %39 = vector.extract_strided_slice %38 {offsets = [0, 0, 0], sizes = [1, 8, 8], strides = [1, 1, 1]} : vector<4x8x8xf32> to vector<1x8x8xf32>
      %40 = vector.shape_cast %39 : vector<1x8x8xf32> to vector<8x8xf32>
      %c0_35 = arith.constant 0 : index
      %c0_36 = arith.constant 0 : index
      %c0_37 = arith.constant 0 : index
      %41 = vector.load %arg6[%c0_35, %c0_36, %c0_37] : memref<1x8x32xf32, #tpu.memory_space<vmem>>, vector<1x8x8xf32>
      %42 = vector.shape_cast %41 : vector<1x8x8xf32> to vector<8x8xf32>
      %43 = vector.shape_cast %40 : vector<8x8xf32> to vector<1x8x8xf32>
      tpu.vector_store %arg6[%c0_35, %c0_36, %c0_37], %43 {strides = array<i32>} : memref<1x8x32xf32, #tpu.memory_space<vmem>>, vector<1x8x8xf32>,
      %44 = vector.extract_strided_slice %38 {offsets = [1, 0, 0], sizes = [1, 8, 8], strides = [1, 1, 1]} : vector<4x8x8xf32> to vector<1x8x8xf32>
      %45 = vector.shape_cast %44 : vector<1x8x8xf32> to vector<8x8xf32>
      %c0_38 = arith.constant 0 : index
      %c0_39 = arith.constant 0 : index
      %c8 = arith.constant 8 : index
      %46 = vector.load %arg6[%c0_38, %c0_39, %c8] : memref<1x8x32xf32, #tpu.memory_space<vmem>>, vector<1x8x8xf32>
      %47 = vector.shape_cast %46 : vector<1x8x8xf32> to vector<8x8xf32>
      %48 = vector.shape_cast %45 : vector<8x8xf32> to vector<1x8x8xf32>
      tpu.vector_store %arg6[%c0_38, %c0_39, %c8], %48 {strides = array<i32>} : memref<1x8x32xf32, #tpu.memory_space<vmem>>, vector<1x8x8xf32>,
      %49 = vector.extract_strided_slice %38 {offsets = [2, 0, 0], sizes = [1, 8, 8], strides = [1, 1, 1]} : vector<4x8x8xf32> to vector<1x8x8xf32>
      %50 = vector.shape_cast %49 : vector<1x8x8xf32> to vector<8x8xf32>
      %c0_40 = arith.constant 0 : index
      %c0_41 = arith.constant 0 : index
      %c16 = arith.constant 16 : index
      %51 = vector.load %arg6[%c0_40, %c0_41, %c16] : memref<1x8x32xf32, #tpu.memory_space<vmem>>, vector<1x8x8xf32>
      %52 = vector.shape_cast %51 : vector<1x8x8xf32> to vector<8x8xf32>
      %53 = vector.shape_cast %50 : vector<8x8xf32> to vector<1x8x8xf32>
      tpu.vector_store %arg6[%c0_40, %c0_41, %c16], %53 {strides = array<i32>} : memref<1x8x32xf32, #tpu.memory_space<vmem>>, vector<1x8x8xf32>,
      %54 = vector.extract_strided_slice %38 {offsets = [3, 0, 0], sizes = [1, 8, 8], strides = [1, 1, 1]} : vector<4x8x8xf32> to vector<1x8x8xf32>
      %55 = vector.shape_cast %54 : vector<1x8x8xf32> to vector<8x8xf32>
      %c0_42 = arith.constant 0 : index
      %c0_43 = arith.constant 0 : index
      %c24 = arith.constant 24 : index
      %56 = vector.load %arg6[%c0_42, %c0_43, %c24] : memref<1x8x32xf32, #tpu.memory_space<vmem>>, vector<1x8x8xf32>
      %57 = vector.shape_cast %56 : vector<1x8x8xf32> to vector<8x8xf32>
      %58 = vector.shape_cast %55 : vector<8x8xf32> to vector<1x8x8xf32>
      tpu.vector_store %arg6[%c0_42, %c0_43, %c24], %58 {strides = array<i32>} : memref<1x8x32xf32, #tpu.memory_space<vmem>>, vector<1x8x8xf32>,
    } else {
    }
    return
  }
  func.func @transform_0(%arg0: i32, %arg1: i32, %arg2: i32) -> (i32, i32, i32, i32) {
    %c0_i32 = arith.constant 0 : i32
    %c0_i32_0 = arith.constant 0 : i32
    %c0_i32_1 = arith.constant 0 : i32
    return %arg0, %arg1, %c0_i32, %c0_i32_0 : i32, i32, i32, i32
  }
  func.func @transform_1(%arg0: i32, %arg1: i32, %arg2: i32) -> (i32, i32, i32, i32) {
    %c0_i32 = arith.constant 0 : i32
    %c0_i32_0 = arith.constant 0 : i32
    %c0_i32_1 = arith.constant 0 : i32
    return %arg0, %arg2, %c0_i32, %c0_i32_0 : i32, i32, i32, i32
  }
  func.func @transform_2(%arg0: i32, %arg1: i32, %arg2: i32) -> (i32, i32, i32) {
    %c0_i32 = arith.constant 0 : i32
    %c0_i32_0 = arith.constant 0 : i32
    %c0_i32_1 = arith.constant 0 : i32
    %c0_i32_2 = arith.constant 0 : i32
    return %c0_i32, %c0_i32_0, %c0_i32_1 : i32, i32, i32
  }
  func.func @transform_3(%arg0: i32, %arg1: i32, %arg2: i32) -> (i32, i32, i32) {
    %c0_i32 = arith.constant 0 : i32
    %c0_i32_0 = arith.constant 0 : i32
    return %arg0, %arg1, %c0_i32 : i32, i32, i32
  }
}

</mosaic_0001>

<llo_original>
// kernel: relative_mha_forward.4
$region0: #{relative_mha_forward.4}
  #allocation0 [shape = 'u32[]', space=smem, size = 0x4, offset = 0x4, fixed_abs, tag = 'smem constant byte address 0x4 - core index']
  #allocation1 [shape = 'u32[144,128]{1,0:T(1,128)}', space=vmem, size = 0x12000, scoped, tag = 'internal scratch']
  #allocation2 [shape = 'f32[32,32]{1,0:T(8,128)}', space=vmem, size = 0x4000, scoped, tag = 'scratch operand']
  %s0 = inlined_call_operand.vmem [shape: f32[32,32], index: 0, kind: input, shape index: {}]
  %s1 = inlined_call_operand.vmem [shape: f32[32,32], index: 1, kind: input, shape index: {}]
  %s2 = inlined_call_operand.vmem [shape: f32[32,32], index: 2, kind: output, shape index: {}]
  %s3 = sld [smem:[#allocation0]]
  $region26: #{relative_mha_forward.4} parent=0
    _
  %s5 = ssub.s32 1, %s3
  %s6 = scalar_select 0, %s5, %s3
  // Predicated region
  $region2: #{relative_mha_forward.4} parent=0 // pred_check
    _
  $region3: #{relative_mha_forward.4} parent=0 // pred_check_branch
    %8 = sbr.rel (0) target = $region5
  $region4: #{relative_mha_forward.4} parent=0 // pred_region
    _
  $region5: #{relative_mha_forward.4} parent=0 // pred_fallthru
    _
  // Predicated region
  $region6: #{relative_mha_forward.4} parent=0 // pred_check
    _
  $region7: #{relative_mha_forward.4} parent=0 // pred_check_branch
    %10 = sbr.rel (0) target = $region9
  $region8: #{relative_mha_forward.4} parent=0 // pred_region
    _
  $region9: #{relative_mha_forward.4} parent=0 // pred_fallthru
    _
  %p11 = scmp.eq.s32.totalorder 0, 0
  // Predicated region
  $region10: #{relative_mha_forward.4} parent=0 // pred_check
    %p12 = pneg %p11
  $region11: #{relative_mha_forward.4} parent=0 // pred_check_branch
    %14 = sbr.rel (%p12) target = $region13
  $region12: #{relative_mha_forward.4} parent=0 // pred_region
    %vm15 = vcmask 261120
    %16 = vst.msk [vmem:[#allocation2] sm:$0xff] %vm15, 0.0
    %17 = vst.msk [vmem:[#allocation2 + $0x8] sm:$0xff] %vm15, 0.0
    %18 = vst.msk [vmem:[#allocation2 + $0x10] sm:$0xff] %vm15, 0.0
    %19 = vst.msk [vmem:[#allocation2 + $0x18] sm:$0xff] %vm15, 0.0
  $region13: #{relative_mha_forward.4} parent=0 // pred_fallthru
    _
  %v20 = vld [vmem:[#allocation2] sm:$0xff]
  %v21 = vld [vmem:[#allocation2 + $0x8] sm:$0xff]
  %v22 = vld [vmem:[#allocation2 + $0x10] sm:$0xff]
  %v23 = vld [vmem:[#allocation2 + $0x18] sm:$0xff]
  %v24 = vld [vmem:[%s0] sm:$0xff]
  %v25 = vld [vmem:[%s0 + $0x8] sm:$0xff]
  %v26 = vld [vmem:[%s0 + $0x10] sm:$0xff]
  %v27 = vld [vmem:[%s0 + $0x18] sm:$0xff]
  %v28 = vld [vmem:[%s1] sm:$0xff]
  %v29 = vld [vmem:[%s1 + $0x8] sm:$0xff]
  %v30 = vld [vmem:[%s1 + $0x10] sm:$0xff]
  %v31 = vld [vmem:[%s1 + $0x18] sm:$0xff]
  %vm32 = vcmask 261120
  %v34 = vsel %vm32, %v24, 0
  %v37 = vsel %vm32, %v25, 0
  %v40 = vsel %vm32, %v26, 0
  %v43 = vsel %vm32, %v27, 0
  %45 = vmatprep.subr.mxu0 0.0
  %46 = vmatpush1.msra.mxu0 0.0
  %47 = vmatprep.subr.mxu0 0.0
  %48 = vmatpush1.msra.mxu0 0.0
  %49 = vmatprep.subr.mxu0 0.0
  %50 = vmatpush1.msra.mxu0 0.0
  %51 = vmatprep.subr.mxu0 0.0
  %52 = vmatpush1.msra.mxu0 0.0
  %53 = vmatprep.subr.mxu0 0.0
  %54 = vmatpush1.msra.mxu0 0.0
  %55 = vmatprep.subr.mxu0 0.0
  %56 = vmatpush1.msra.mxu0 0.0
  %57 = vmatprep.subr.mxu0 0.0
  %58 = vmatpush1.msra.mxu0 0.0
  %59 = vmatprep.subr.mxu0 0.0
  %60 = vmatpush1.msra.mxu0 0.0
  %61 = vmatprep.subr.mxu0 0.0
  %62 = vmatpush1.msra.mxu0 0.0
  %63 = vmatprep.subr.mxu0 0.0
  %64 = vmatpush1.msra.mxu0 0.0
  %65 = vmatprep.subr.mxu0 0.0
  %66 = vmatpush1.msra.mxu0 0.0
  %67 = vmatprep.subr.mxu0 0.0
  %68 = vmatpush1.msra.mxu0 0.0
  %69 = vmatprep.subr.mxu0 0.0
  %70 = vmatpush1.msra.mxu0 %v31
  %71 = vmatprep.subr.mxu0 0.0
  %72 = vmatpush1.msra.mxu0 %v30
  %73 = vmatprep.subr.mxu0 0.0
  %74 = vmatpush1.msra.mxu0 %v29
  %75 = vmatprep.subr.mxu0 0.0
  %76 = vmatpush1.msra.mxu0 %v28
  %77 = vmatprep.subr.mxu0 0.0
  %78 = vmatpush2.msra.mxu0 0.0
  %79 = vmatprep.subr.mxu0 0.0
  %80 = vmatpush2.msra.mxu0 0.0
  %81 = vmatprep.subr.mxu0 0.0
  %82 = vmatpush2.msra.mxu0 0.0
  %83 = vmatprep.subr.mxu0 0.0
  %84 = vmatpush2.msra.mxu0 0.0
  %85 = vmatprep.subr.mxu0 0.0
  %86 = vmatpush2.msra.mxu0 0.0
  %87 = vmatprep.subr.mxu0 0.0
  %88 = vmatpush2.msra.mxu0 0.0
  %89 = vmatprep.subr.mxu0 0.0
  %90 = vmatpush2.msra.mxu0 0.0
  %91 = vmatprep.subr.mxu0 0.0
  %92 = vmatpush2.msra.mxu0 0.0
  %93 = vmatprep.subr.mxu0 0.0
  %94 = vmatpush2.msra.mxu0 0.0
  %95 = vmatprep.subr.mxu0 0.0
  %96 = vmatpush2.msra.mxu0 0.0
  %97 = vmatprep.subr.mxu0 0.0
  %98 = vmatpush2.msra.mxu0 0.0
  %99 = vmatprep.subr.mxu0 0.0
  %100 = vmatpush2.msra.mxu0 0.0
  %101 = vmatprep.subr.mxu0 0.0
  %102 = vmatpush2.msra.mxu0 0.0
  %103 = vmatprep.subr.mxu0 0.0
  %104 = vmatpush2.msra.mxu0 0.0
  %105 = vmatprep.subr.mxu0 0.0
  %106 = vmatpush2.msra.mxu0 0.0
  %107 = vmatprep.subr.mxu0 0.0
  %108 = vmatpush2.msra.mxu0 0.0
  %109 = vmatprep.mubr.f32.mxu0 0.0
  %110 = vmatmul.mubr.f32.gmra.mxu0 %v34
  %v111 = vpop.f32.mrf.mxu0
  %v112 = vadd.f32 0.0, %v111
  %v113 = vpop.f32.mrf.mxu0
  %114 = vmatprep.mubr.f32.mxu0 0.0
  %115 = vmatmul.mubr.f32.gmra.mxu0 %v37
  %v116 = vpop.f32.mrf.mxu0
  %v117 = vadd.f32 0.0, %v116
  %v118 = vpop.f32.mrf.mxu0
  %119 = vmatprep.mubr.f32.mxu0 0.0
  %120 = vmatmul.mubr.f32.gmra.mxu0 %v40
  %v121 = vpop.f32.mrf.mxu0
  %v122 = vadd.f32 0.0, %v121
  %v123 = vpop.f32.mrf.mxu0
  %124 = vmatprep.mubr.f32.mxu0 0.0
  %125 = vmatmul.mubr.f32.gmra.mxu0 %v43
  %v126 = vpop.f32.mrf.mxu0
  %v127 = vadd.f32 0.0, %v126
  %v128 = vpop.f32.mrf.mxu0
  %129 = vdwg.mxu0
  %v130 = vadd.f32 %v20, %v112
  %v131 = vadd.f32 %v21, %v117
  %v132 = vadd.f32 %v22, %v122
  %v133 = vadd.f32 %v23, %v127
  %134 = vst.msk [vmem:[#allocation2] sm:$0xff] %vm32, %v130
  %135 = vst.msk [vmem:[#allocation2 + $0x8] sm:$0xff] %vm32, %v131
  %136 = vst.msk [vmem:[#allocation2 + $0x10] sm:$0xff] %vm32, %v132
  %137 = vst.msk [vmem:[#allocation2 + $0x18] sm:$0xff] %vm32, %v133
  // Predicated region
  $region14: #{relative_mha_forward.4} parent=0 // pred_check
    %p138 = pneg %p11
  $region15: #{relative_mha_forward.4} parent=0 // pred_check_branch
    %140 = sbr.rel (%p138) target = $region17
  $region16: #{relative_mha_forward.4} parent=0 // pred_region
    %v141 = vld [vmem:[#allocation2] sm:$0xff]
    %v142 = vld [vmem:[#allocation2 + $0x8] sm:$0xff]
    %v143 = vld [vmem:[#allocation2 + $0x10] sm:$0xff]
    %v144 = vld [vmem:[#allocation2 + $0x18] sm:$0xff]
    %145 = vst.msk [vmem:[%s2] sm:$0xff] %vm32, %v141
    %146 = vst.msk [vmem:[%s2 + $0x8] sm:$0xff] %vm32, %v142
    %147 = vst.msk [vmem:[%s2 + $0x10] sm:$0xff] %vm32, %v143
    %148 = vst.msk [vmem:[%s2 + $0x18] sm:$0xff] %vm32, %v144
  $region17: #{relative_mha_forward.4} parent=0 // pred_fallthru
    _
  // Predicated region
  $region18: #{relative_mha_forward.4} parent=0 // pred_check
    _
  $region19: #{relative_mha_forward.4} parent=0 // pred_check_branch
    %150 = sbr.rel (0) target = $region21
  $region20: #{relative_mha_forward.4} parent=0 // pred_region
    _
  $region21: #{relative_mha_forward.4} parent=0 // pred_fallthru
    _
  // Predicated region
  $region22: #{relative_mha_forward.4} parent=0 // pred_check
    _
  $region23: #{relative_mha_forward.4} parent=0 // pred_check_branch
    %152 = sbr.rel (0) target = $region25
  $region24: #{relative_mha_forward.4} parent=0 // pred_region
    _
  $region25: #{relative_mha_forward.4} parent=0 // pred_fallthru
    _

// kernel: relative_mha_forward.5
$region0: #{relative_mha_forward.5}
  #allocation0 [shape = 'u32[]', space=smem, size = 0x4, offset = 0x4, fixed_abs, tag = 'smem constant byte address 0x4 - core index']
  #allocation1 [shape = 'u32[144,128]{1,0:T(1,128)}', space=vmem, size = 0x12000, scoped, tag = 'internal scratch']
  #allocation2 [shape = 'f32[16,64]{1,0:T(8,128)}', space=vmem, size = 0x2000, scoped, tag = 'scratch operand']
  %s0 = inlined_call_operand.vmem [shape: f32[48,32], index: 0, kind: input, shape index: {}]
  %s1 = inlined_call_operand.vmem [shape: f32[32,64], index: 1, kind: input, shape index: {}]
  %s2 = inlined_call_operand.vmem [shape: f32[48,64], index: 2, kind: output, shape index: {}]
  %s3 = sld [smem:[#allocation0]]
  $region49: #{relative_mha_forward.5} parent=0
    _
  %s5 = ssub.s32 1, %s3
  %s6 = scalar_select 0, %s5, %s3
  loop: start=0, step=1, limit=5
  $region2: #{relative_mha_forward.5} parent=0 // loop_pre_header
    _
  $region3: #{relative_mha_forward.5} parent=0 // loop_header
    %s8 = sphi 0, %s12
    %p9 = scmp.ge.s32.totalorder %s8, 5
    %s15 = sphi 0, %s34
    %s16 = sphi 0, %s30
    %s17 = sphi 0, %s26
    %s18 = sphi 0, %s15
    %s19 = sphi 0, %s16
    %s20 = sphi 0, %s17
    %s21 = sphi 0, %s18
    %s22 = sphi 0, %s19
    %s23 = sphi 0, %s20
    %s39 = sphi 0, %s41
    %s42 = sphi 0, %s39
    %s43 = sphi 0, %s42
    %s59 = sphi 0, %s43
    %s67 = sphi 0, %s69
    %s70 = sphi 0, %s67
    %s71 = sphi 0, %s70
    %s87 = sphi 0, %s71
    %s95 = sphi 0, %s97
    %s98 = sphi 0, %s95
    %s99 = sphi 0, %s98
    %s115 = sphi 0, %s99
  $region4: #{relative_mha_forward.5} parent=0 // loop_header_branch
    %11 = sbr.rel (%p9) target = $region8
  $region5: #{relative_mha_forward.5} parent=0 // loop_body
    %s13 = ssub.s32 %s8, 1
    %s14 = ssub.s32 %s8, 2
    %s24 = sadd.s32 1, %s17
    %p25 = scmp.ge.s32.totalorder %s24, 1
    %s26 = scalar_select %p25, 0, %s24
    %s27 = sadd.s32 1, %s16
    %s28 = scalar_select %p25, %s27, %s16
    %p29 = scmp.ge.s32.totalorder %s28, 1
    %s30 = scalar_select %p29, 0, %s28
    %s31 = sadd.s32 1, %s15
    %s32 = scalar_select %p29, %s31, %s15
    %p33 = scmp.ge.s32.totalorder %s32, 3
    %s34 = scalar_select %p33, 0, %s32
    %s35 = ssub.s32 %s15, %s34
    %s36 = ssub.s32 %s17, %s26
    %s37 = sor.u32 %s35, %s36
    %p38 = scmp.eq.s32.totalorder %s37, 0
    %s40 = sadd.s32 %s39, 1
    %s41 = scalar_select %p38, %s39, %s40
    %p44 = pneg %p38
    %p45 = scmp.eq.s32.totalorder %s8, 2
    %p46 = por %p44, %p45
    %p47 = scmp.ne.s32.totalorder %s39, %s42
    %p48 = scmp.eq.s32.totalorder %s8, 0
    %p49 = por %p47, %p48
    %p50 = scmp.ne.s32.totalorder %s39, %s42
    %p51 = scmp.eq.s32.totalorder %s13, 2
    %p52 = por %p50, %p51
    %p53 = scmp.ne.s32.totalorder %s42, %s43
    %p54 = scmp.eq.s32.totalorder %s13, 0
    %p55 = por %p53, %p54
    %p56 = scmp.ne.s32.totalorder %s42, %s43
    %p57 = scmp.eq.s32.totalorder %s14, 2
    %p58 = por %p56, %p57
    %p60 = scmp.ne.s32.totalorder %s43, %s59
    %p61 = scmp.eq.s32.totalorder %s14, 0
    %p62 = por %p60, %p61
    %s63 = ssub.s32 %s17, %s26
    %s64 = ssub.s32 %s16, %s30
    %s65 = sor.u32 %s63, %s64
    %p66 = scmp.eq.s32.totalorder %s65, 0
    %s68 = sadd.s32 %s67, 1
    %s69 = scalar_select %p66, %s67, %s68
    %p72 = pneg %p66
    %p73 = scmp.eq.s32.totalorder %s8, 2
    %p74 = por %p72, %p73
    %p75 = scmp.ne.s32.totalorder %s67, %s70
    %p76 = scmp.eq.s32.totalorder %s8, 0
    %p77 = por %p75, %p76
    %p78 = scmp.ne.s32.totalorder %s67, %s70
    %p79 = scmp.eq.s32.totalorder %s13, 2
    %p80 = por %p78, %p79
    %p81 = scmp.ne.s32.totalorder %s70, %s71
    %p82 = scmp.eq.s32.totalorder %s13, 0
    %p83 = por %p81, %p82
    %p84 = scmp.ne.s32.totalorder %s70, %s71
    %p85 = scmp.eq.s32.totalorder %s14, 2
    %p86 = por %p84, %p85
    %p88 = scmp.ne.s32.totalorder %s71, %s87
    %p89 = scmp.eq.s32.totalorder %s14, 0
    %p90 = por %p88, %p89
    %s91 = ssub.s32 %s15, %s34
    %s92 = ssub.s32 %s16, %s30
    %s93 = sor.u32 %s91, %s92
    %p94 = scmp.eq.s32.totalorder %s93, 0
    %s96 = sadd.s32 %s95, 1
    %s97 = scalar_select %p94, %s95, %s96
    %p100 = pneg %p94
    %p101 = scmp.eq.s32.totalorder %s8, 2
    %p102 = por %p100, %p101
    %p103 = scmp.ne.s32.totalorder %s95, %s98
    %p104 = scmp.eq.s32.totalorder %s8, 0
    %p105 = por %p103, %p104
    %p106 = scmp.ne.s32.totalorder %s95, %s98
    %p107 = scmp.eq.s32.totalorder %s13, 2
    %p108 = por %p106, %p107
    %p109 = scmp.ne.s32.totalorder %s98, %s99
    %p110 = scmp.eq.s32.totalorder %s13, 0
    %p111 = por %p109, %p110
    %p112 = scmp.ne.s32.totalorder %s98, %s99
    %p113 = scmp.eq.s32.totalorder %s14, 2
    %p114 = por %p112, %p113
    %p116 = scmp.ne.s32.totalorder %s99, %s115
    %p117 = scmp.eq.s32.totalorder %s14, 0
    %p118 = por %p116, %p117
    %p119 = scmp.le.s32.totalorder 1, %s8
    %p120 = scmp.lt.s32.totalorder %s8, 4
    %p121 = pnand %p119, %p120
    %p122 = pneg %p121
    // Predicated region
    $region9: #{relative_mha_forward.5} parent=5 // pred_check
      _
    $region10: #{relative_mha_forward.5} parent=5 // pred_check_branch
      %124 = sbr.rel (%p121) target = $region12
    $region11: #{relative_mha_forward.5} parent=5 // pred_region
      %s125 = ssub.s32 %s8, 1
      // Predicated region
      $region13: #{relative_mha_forward.5} parent=11 // pred_check
        %p126 = pneg %p83
      $region14: #{relative_mha_forward.5} parent=11 // pred_check_branch
        %128 = sbr.rel (%p126) target = $region16
      $region15: #{relative_mha_forward.5} parent=11 // pred_region
        %s129 = smul.u32 4, %s20
        %p130 = scmp.lt.s32.totalorder %s129, 3
        %s131 = scalar_select %p130, %s129, 3
        %p132 = scmp.lt.s32.totalorder %s19, 0
        %s133 = scalar_select %p132, %s19, 0
        %s134 = sadd.s32 %s133, %s131
        %s135 = smul.addr %s134, 8
        %s136 = scalar_lea.vmem %s1, %s135
        %s137 = smul.u32 4, %s20
      $region16: #{relative_mha_forward.5} parent=11 // pred_fallthru
        _
    $region12: #{relative_mha_forward.5} parent=5 // pred_fallthru
      _
    %p138 = scmp.lt.s32.totalorder %s8, 3
    // Predicated region
    $region17: #{relative_mha_forward.5} parent=5 // pred_check
      %p139 = pneg %p138
    $region18: #{relative_mha_forward.5} parent=5 // pred_check_branch
      %141 = sbr.rel (%p139) target = $region20
    $region19: #{relative_mha_forward.5} parent=5 // pred_region
      // Predicated region
      $region21: #{relative_mha_forward.5} parent=19 // pred_check
        %p142 = pneg %p49
      $region22: #{relative_mha_forward.5} parent=19 // pred_check_branch
        %144 = sbr.rel (%p142) target = $region24
      $region23: #{relative_mha_forward.5} parent=19 // pred_region
        %s145 = smul.u32 2, %s15
        %p146 = scmp.lt.s32.totalorder %s145, 5
        %s147 = scalar_select %p146, %s145, 5
        %p148 = scmp.lt.s32.totalorder %s17, 0
        %s149 = scalar_select %p148, %s17, 0
        %s150 = sadd.s32 %s149, %s147
        %s151 = smul.addr %s150, 8
        %s152 = scalar_lea.vmem %s0, %s151
        %s153 = smul.u32 2, %s15
      $region24: #{relative_mha_forward.5} parent=19 // pred_fallthru
        _
    $region20: #{relative_mha_forward.5} parent=5 // pred_fallthru
      _
    %p154 = scmp.le.s32.totalorder 1, %s8
    %p155 = scmp.lt.s32.totalorder %s8, 4
    %p156 = pnand %p154, %p155
    %p157 = pneg %p156
    // Predicated region
    $region25: #{relative_mha_forward.5} parent=5 // pred_check
      _
    $region26: #{relative_mha_forward.5} parent=5 // pred_check_branch
      %159 = sbr.rel (%p156) target = $region28
    $region27: #{relative_mha_forward.5} parent=5 // pred_region
      %s160 = ssub.s32 %s8, 1
      %s161 = smul.u32 2, %s18
      %p162 = scmp.lt.s32.totalorder %s161, 5
      %s163 = scalar_select %p162, %s161, 5
      %p164 = scmp.lt.s32.totalorder %s20, 0
      %s165 = scalar_select %p164, %s20, 0
      %s166 = sadd.s32 %s165, %s163
      %s167 = smul.addr %s166, 8
      %s168 = scalar_lea.vmem %s0, %s167
      %p169 = pneg %p55
      %p170 = pneg %p52
      %s171 = smul.u32 4, %s20
      %p172 = scmp.lt.s32.totalorder %s171, 3
      %s173 = scalar_select %p172, %s171, 3
      %p174 = scmp.lt.s32.totalorder %s19, 0
      %s175 = scalar_select %p174, %s19, 0
      %s176 = sadd.s32 %s175, %s173
      %s177 = smul.addr %s176, 8
      %s178 = scalar_lea.vmem %s1, %s177
      %p179 = pneg %p83
      %p180 = pneg %p80
      %p181 = pneg %p111
      %p182 = pneg %p108
      %s183 = smul.u32 2, %s18
      %p184 = scmp.lt.s32.totalorder %s183, 5
      %s185 = scalar_select %p184, %s183, 5
      %p186 = scmp.lt.s32.totalorder %s19, 0
      %s187 = scalar_select %p186, %s19, 0
      %s188 = sadd.s32 %s187, %s185
      %s189 = smul.addr %s188, 8
      %s190 = scalar_lea.vmem %s2, %s189
      %s191 = smul.u32 2, %s18
      %p192 = scmp.lt.s32.totalorder %s191, 5
      %s193 = scalar_select %p192, %s191, 5
      %p194 = scmp.lt.s32.totalorder %s20, 0
      %s195 = scalar_select %p194, %s20, 0
      %s196 = sadd.s32 %s195, %s193
      %s197 = smul.addr %s196, 8
      %s198 = scalar_lea.vmem %s0, %s197
      %s199 = smul.u32 2, %s18
      %s200 = smul.u32 4, %s20
      %p201 = scmp.lt.s32.totalorder %s200, 3
      %s202 = scalar_select %p201, %s200, 3
      %p203 = scmp.lt.s32.totalorder %s19, 0
      %s204 = scalar_select %p203, %s19, 0
      %s205 = sadd.s32 %s204, %s202
      %s206 = smul.addr %s205, 8
      %s207 = scalar_lea.vmem %s1, %s206
      %s208 = smul.u32 4, %s20
      %s209 = smul.u32 2, %s18
      %p210 = scmp.lt.s32.totalorder %s209, 5
      %s211 = scalar_select %p210, %s209, 5
      %p212 = scmp.lt.s32.totalorder %s19, 0
      %s213 = scalar_select %p212, %s19, 0
      %s214 = sadd.s32 %s213, %s211
      %s215 = smul.addr %s214, 8
      %s216 = scalar_lea.vmem %s2, %s215
      %s217 = smul.u32 2, %s18
      %p218 = scmp.eq.s32.totalorder %s20, 0
      // Predicated region
      $region29: #{relative_mha_forward.5} parent=27 // pred_check
        %p219 = pneg %p218
      $region30: #{relative_mha_forward.5} parent=27 // pred_check_branch
        %221 = sbr.rel (%p219) target = $region32
      $region31: #{relative_mha_forward.5} parent=27 // pred_region
        %vm222 = vcmask 523264
        %223 = vst.msk [vmem:[#allocation2] sm:$0xff] %vm222, 0.0
        %224 = vst.msk [vmem:[#allocation2 + $0x8] sm:$0xff] %vm222, 0.0
      $region32: #{relative_mha_forward.5} parent=27 // pred_fallthru
        _
      %v225 = vld [vmem:[#allocation2] sm:$0xff]
      %v226 = vld [vmem:[#allocation2 + $0x8] sm:$0xff]
      %v227 = vld [vmem:[%s198] sm:$0xff]
      %v228 = vld [vmem:[%s198 + $0x8] sm:$0xff]
      %v229 = vld [vmem:[%s207] sm:$0xff]
      %v230 = vld [vmem:[%s207 + $0x8] sm:$0xff]
      %v231 = vld [vmem:[%s207 + $0x10] sm:$0xff]
      %v232 = vld [vmem:[%s207 + $0x18] sm:$0xff]
      %vm233 = vcmask 261120
      %v235 = vsel %vm233, %v227, 0
      %v238 = vsel %vm233, %v228, 0
      %240 = vmatprep.subr.mxu0 0.0
      %241 = vmatpush1.msra.mxu0 0.0
      %242 = vmatprep.subr.mxu0 0.0
      %243 = vmatpush1.msra.mxu0 0.0
      %244 = vmatprep.subr.mxu0 0.0
      %245 = vmatpush1.msra.mxu0 0.0
      %246 = vmatprep.subr.mxu0 0.0
      %247 = vmatpush1.msra.mxu0 0.0
      %248 = vmatprep.subr.mxu0 0.0
      %249 = vmatpush1.msra.mxu0 0.0
      %250 = vmatprep.subr.mxu0 0.0
      %251 = vmatpush1.msra.mxu0 0.0
      %252 = vmatprep.subr.mxu0 0.0
      %253 = vmatpush1.msra.mxu0 0.0
      %254 = vmatprep.subr.mxu0 0.0
      %255 = vmatpush1.msra.mxu0 0.0
      %256 = vmatprep.subr.mxu0 0.0
      %257 = vmatpush1.msra.mxu0 0.0
      %258 = vmatprep.subr.mxu0 0.0
      %259 = vmatpush1.msra.mxu0 0.0
      %260 = vmatprep.subr.mxu0 0.0
      %261 = vmatpush1.msra.mxu0 0.0
      %262 = vmatprep.subr.mxu0 0.0
      %263 = vmatpush1.msra.mxu0 0.0
      %264 = vmatprep.subr.mxu0 0.0
      %265 = vmatpush1.msra.mxu0 %v232
      %266 = vmatprep.subr.mxu0 0.0
      %267 = vmatpush1.msra.mxu0 %v231
      %268 = vmatprep.subr.mxu0 0.0
      %269 = vmatpush1.msra.mxu0 %v230
      %270 = vmatprep.subr.mxu0 0.0
      %271 = vmatpush1.msra.mxu0 %v229
      %272 = vmatprep.subr.mxu0 0.0
      %273 = vmatpush2.msra.mxu0 0.0
      %274 = vmatprep.subr.mxu0 0.0
      %275 = vmatpush2.msra.mxu0 0.0
      %276 = vmatprep.subr.mxu0 0.0
      %277 = vmatpush2.msra.mxu0 0.0
      %278 = vmatprep.subr.mxu0 0.0
      %279 = vmatpush2.msra.mxu0 0.0
      %280 = vmatprep.subr.mxu0 0.0
      %281 = vmatpush2.msra.mxu0 0.0
      %282 = vmatprep.subr.mxu0 0.0
      %283 = vmatpush2.msra.mxu0 0.0
      %284 = vmatprep.subr.mxu0 0.0
      %285 = vmatpush2.msra.mxu0 0.0
      %286 = vmatprep.subr.mxu0 0.0
      %287 = vmatpush2.msra.mxu0 0.0
      %288 = vmatprep.subr.mxu0 0.0
      %289 = vmatpush2.msra.mxu0 0.0
      %290 = vmatprep.subr.mxu0 0.0
      %291 = vmatpush2.msra.mxu0 0.0
      %292 = vmatprep.subr.mxu0 0.0
      %293 = vmatpush2.msra.mxu0 0.0
      %294 = vmatprep.subr.mxu0 0.0
      %295 = vmatpush2.msra.mxu0 0.0
      %296 = vmatprep.subr.mxu0 0.0
      %297 = vmatpush2.msra.mxu0 0.0
      %298 = vmatprep.subr.mxu0 0.0
      %299 = vmatpush2.msra.mxu0 0.0
      %300 = vmatprep.subr.mxu0 0.0
      %301 = vmatpush2.msra.mxu0 0.0
      %302 = vmatprep.subr.mxu0 0.0
      %303 = vmatpush2.msra.mxu0 0.0
      %304 = vmatprep.mubr.f32.mxu0 0.0
      %305 = vmatmul.mubr.f32.gmra.mxu0 %v235
      %v306 = vpop.f32.mrf.mxu0
      %v307 = vadd.f32 0.0, %v306
      %v308 = vpop.f32.mrf.mxu0
      %309 = vmatprep.mubr.f32.mxu0 0.0
      %310 = vmatmul.mubr.f32.gmra.mxu0 %v238
      %v311 = vpop.f32.mrf.mxu0
      %v312 = vadd.f32 0.0, %v311
      %v313 = vpop.f32.mrf.mxu0
      %314 = vdwg.mxu0
      %v315 = vadd.f32 %v225, %v307
      %v316 = vadd.f32 %v226, %v312
      %vm317 = vcmask 523264
      %318 = vst.msk [vmem:[#allocation2] sm:$0xff] %vm317, %v315
      %319 = vst.msk [vmem:[#allocation2 + $0x8] sm:$0xff] %vm317, %v316
      // Predicated region
      $region33: #{relative_mha_forward.5} parent=27 // pred_check
        %p320 = pneg %p218
      $region34: #{relative_mha_forward.5} parent=27 // pred_check_branch
        %322 = sbr.rel (%p320) target = $region36
      $region35: #{relative_mha_forward.5} parent=27 // pred_region
        %v323 = vld [vmem:[#allocation2] sm:$0xff]
        %v324 = vld [vmem:[#allocation2 + $0x8] sm:$0xff]
        %325 = vst.msk [vmem:[%s216] sm:$0xff] %vm317, %v323
        %326 = vst.msk [vmem:[%s216 + $0x8] sm:$0xff] %vm317, %v324
      $region36: #{relative_mha_forward.5} parent=27 // pred_fallthru
        _
      %s327 = smul.u32 2, %s18
      %p328 = scmp.lt.s32.totalorder %s327, 5
      %s329 = scalar_select %p328, %s327, 5
      %p330 = scmp.lt.s32.totalorder %s19, 0
      %s331 = scalar_select %p330, %s19, 0
      %s332 = sadd.s32 %s331, %s329
      %s333 = smul.addr %s332, 8
      %s334 = scalar_lea.vmem %s2, %s333
      // Predicated region
      $region37: #{relative_mha_forward.5} parent=27 // pred_check
        %p335 = pneg %p108
      $region38: #{relative_mha_forward.5} parent=27 // pred_check_branch
        %337 = sbr.rel (%p335) target = $region40
      $region39: #{relative_mha_forward.5} parent=27 // pred_region
        %s338 = smul.u32 2, %s18
      $region40: #{relative_mha_forward.5} parent=27 // pred_fallthru
        _
    $region28: #{relative_mha_forward.5} parent=5 // pred_fallthru
      _
    %p339 = scmp.le.s32.totalorder 2, %s8
    // Predicated region
    $region41: #{relative_mha_forward.5} parent=5 // pred_check
      %p340 = pneg %p339
    $region42: #{relative_mha_forward.5} parent=5 // pred_check_branch
      %342 = sbr.rel (%p340) target = $region44
    $region43: #{relative_mha_forward.5} parent=5 // pred_region
      %s343 = ssub.s32 %s8, 2
      // Predicated region
      $region45: #{relative_mha_forward.5} parent=43 // pred_check
        %p344 = pneg %p114
      $region46: #{relative_mha_forward.5} parent=43 // pred_check_branch
        %346 = sbr.rel (%p344) target = $region48
      $region47: #{relative_mha_forward.5} parent=43 // pred_region
        %s347 = smul.u32 2, %s21
        %p348 = scmp.lt.s32.totalorder %s347, 5
        %s349 = scalar_select %p348, %s347, 5
        %p350 = scmp.lt.s32.totalorder %s22, 0
        %s351 = scalar_select %p350, %s22, 0
        %s352 = sadd.s32 %s351, %s349
        %s353 = smul.addr %s352, 8
        %s354 = scalar_lea.vmem %s2, %s353
      $region48: #{relative_mha_forward.5} parent=43 // pred_fallthru
        _
    $region44: #{relative_mha_forward.5} parent=5 // pred_fallthru
      _
  $region6: #{relative_mha_forward.5} parent=0 // loop_footer
    %s12 = sadd.s32 1, %s8
  $region7: #{relative_mha_forward.5} parent=0 // loop_footer_branch
    %7 = sbr.rel target = $region3
  $region8: #{relative_mha_forward.5} parent=0 // loop_exit
    _

// kernel: relative_mha_forward.6
$region0: #{relative_mha_forward.6}
  #allocation0 [shape = 'u32[]', space=smem, size = 0x4, offset = 0x4, fixed_abs, tag = 'smem constant byte address 0x4 - core index']
  #allocation1 [shape = 'u32[144,128]{1,0:T(1,128)}', space=vmem, size = 0x12000, scoped, tag = 'internal scratch']
  #allocation2 [shape = 'f32[4,8,8]{2,1,0:T(8,128)}', space=vmem, size = 0x4000, scoped, tag = 'scratch operand']
  #allocation3 [shape = 'f32[4,8,1]{2,1,0:T(8,128)}', space=vmem, size = 0x4000, scoped, tag = 'scratch operand']
  #allocation4 [shape = 'f32[4,8,1]{2,1,0:T(8,128)}', space=vmem, size = 0x4000, scoped, tag = 'scratch operand']
  #allocation5 [shape = 'f32[4,8,8]{2,1,0:T(8,128)}', space=vmem, size = 0x4000, scoped, tag = 'scratch operand']
  %s0 = inlined_call_operand.vmem [shape: f32[2,16,4,8], index: 0, kind: input, shape index: {}]
  %s1 = inlined_call_operand.vmem [shape: f32[2,24,8,8], index: 1, kind: input, shape index: {}]
  %s2 = inlined_call_operand.vmem [shape: f32[1,4,8], index: 2, kind: input, shape index: {}]
  %s3 = inlined_call_operand.vmem [shape: f32[2,16,32], index: 3, kind: output, shape index: {}]
  %s4 = sld [smem:[#allocation0]]
  $region53: #{relative_mha_forward.6} parent=0
    _
  %s6 = ssub.s32 1, %s4
  %s7 = scalar_select 0, %s6, %s4
  loop: start=0, step=1, limit=14
  $region2: #{relative_mha_forward.6} parent=0 // loop_pre_header
    _
  $region3: #{relative_mha_forward.6} parent=0 // loop_header
    %s9 = sphi 0, %s13
    %p10 = scmp.ge.s32.totalorder %s9, 14
    %s16 = sphi 0, %s35
    %s17 = sphi 0, %s31
    %s18 = sphi 0, %s27
    %s19 = sphi 0, %s16
    %s20 = sphi 0, %s17
    %s21 = sphi 0, %s18
    %s22 = sphi 0, %s19
    %s23 = sphi 0, %s20
    %s24 = sphi 0, %s21
    %s40 = sphi 0, %s42
    %s43 = sphi 0, %s40
    %s44 = sphi 0, %s43
    %s60 = sphi 0, %s44
    %s68 = sphi 0, %s70
    %s71 = sphi 0, %s68
    %s72 = sphi 0, %s71
    %s88 = sphi 0, %s72
    %s92 = sphi 0, %s92
    %s94 = sphi 0, %s92
    %s95 = sphi 0, %s94
    %s109 = sphi 0, %s95
    %s117 = sphi 0, %s119
    %s120 = sphi 0, %s117
    %s121 = sphi 0, %s120
    %s137 = sphi 0, %s121
  $region4: #{relative_mha_forward.6} parent=0 // loop_header_branch
    %12 = sbr.rel (%p10) target = $region8
  $region5: #{relative_mha_forward.6} parent=0 // loop_body
    %s14 = ssub.s32 %s9, 1
    %s15 = ssub.s32 %s9, 2
    %s25 = sadd.s32 1, %s18
    %p26 = scmp.ge.s32.totalorder %s25, 3
    %s27 = scalar_select %p26, 0, %s25
    %s28 = sadd.s32 1, %s17
    %s29 = scalar_select %p26, %s28, %s17
    %p30 = scmp.ge.s32.totalorder %s29, 2
    %s31 = scalar_select %p30, 0, %s29
    %s32 = sadd.s32 1, %s16
    %s33 = scalar_select %p30, %s32, %s16
    %p34 = scmp.ge.s32.totalorder %s33, 2
    %s35 = scalar_select %p34, 0, %s33
    %s36 = ssub.s32 %s16, %s35
    %s37 = ssub.s32 %s17, %s31
    %s38 = sor.u32 %s36, %s37
    %p39 = scmp.eq.s32.totalorder %s38, 0
    %s41 = sadd.s32 %s40, 1
    %s42 = scalar_select %p39, %s40, %s41
    %p45 = pneg %p39
    %p46 = scmp.eq.s32.totalorder %s9, 11
    %p47 = por %p45, %p46
    %p48 = scmp.ne.s32.totalorder %s40, %s43
    %p49 = scmp.eq.s32.totalorder %s9, 0
    %p50 = por %p48, %p49
    %p51 = scmp.ne.s32.totalorder %s40, %s43
    %p52 = scmp.eq.s32.totalorder %s14, 11
    %p53 = por %p51, %p52
    %p54 = scmp.ne.s32.totalorder %s43, %s44
    %p55 = scmp.eq.s32.totalorder %s14, 0
    %p56 = por %p54, %p55
    %p57 = scmp.ne.s32.totalorder %s43, %s44
    %p58 = scmp.eq.s32.totalorder %s15, 11
    %p59 = por %p57, %p58
    %p61 = scmp.ne.s32.totalorder %s44, %s60
    %p62 = scmp.eq.s32.totalorder %s15, 0
    %p63 = por %p61, %p62
    %s64 = ssub.s32 %s16, %s35
    %s65 = ssub.s32 %s18, %s27
    %s66 = sor.u32 %s64, %s65
    %p67 = scmp.eq.s32.totalorder %s66, 0
    %s69 = sadd.s32 %s68, 1
    %s70 = scalar_select %p67, %s68, %s69
    %p73 = pneg %p67
    %p74 = scmp.eq.s32.totalorder %s9, 11
    %p75 = por %p73, %p74
    %p76 = scmp.ne.s32.totalorder %s68, %s71
    %p77 = scmp.eq.s32.totalorder %s9, 0
    %p78 = por %p76, %p77
    %p79 = scmp.ne.s32.totalorder %s68, %s71
    %p80 = scmp.eq.s32.totalorder %s14, 11
    %p81 = por %p79, %p80
    %p82 = scmp.ne.s32.totalorder %s71, %s72
    %p83 = scmp.eq.s32.totalorder %s14, 0
    %p84 = por %p82, %p83
    %p85 = scmp.ne.s32.totalorder %s71, %s72
    %p86 = scmp.eq.s32.totalorder %s15, 11
    %p87 = por %p85, %p86
    %p89 = scmp.ne.s32.totalorder %s72, %s88
    %p90 = scmp.eq.s32.totalorder %s15, 0
    %p91 = por %p89, %p90
    %s93 = sadd.s32 %s92, 1
    %p96 = scmp.eq.s32.totalorder %s9, 11
    %p97 = scmp.ne.s32.totalorder %s92, %s94
    %p98 = scmp.eq.s32.totalorder %s9, 0
    %p99 = por %p97, %p98
    %p100 = scmp.ne.s32.totalorder %s92, %s94
    %p101 = scmp.eq.s32.totalorder %s14, 11
    %p102 = por %p100, %p101
    %p103 = scmp.ne.s32.totalorder %s94, %s95
    %p104 = scmp.eq.s32.totalorder %s14, 0
    %p105 = por %p103, %p104
    %p106 = scmp.ne.s32.totalorder %s94, %s95
    %p107 = scmp.eq.s32.totalorder %s15, 11
    %p108 = por %p106, %p107
    %p110 = scmp.ne.s32.totalorder %s95, %s109
    %p111 = scmp.eq.s32.totalorder %s15, 0
    %p112 = por %p110, %p111
    %s113 = ssub.s32 %s16, %s35
    %s114 = ssub.s32 %s17, %s31
    %s115 = sor.u32 %s113, %s114
    %p116 = scmp.eq.s32.totalorder %s115, 0
    %s118 = sadd.s32 %s117, 1
    %s119 = scalar_select %p116, %s117, %s118
    %p122 = pneg %p116
    %p123 = scmp.eq.s32.totalorder %s9, 11
    %p124 = por %p122, %p123
    %p125 = scmp.ne.s32.totalorder %s117, %s120
    %p126 = scmp.eq.s32.totalorder %s9, 0
    %p127 = por %p125, %p126
    %p128 = scmp.ne.s32.totalorder %s117, %s120
    %p129 = scmp.eq.s32.totalorder %s14, 11
    %p130 = por %p128, %p129
    %p131 = scmp.ne.s32.totalorder %s120, %s121
    %p132 = scmp.eq.s32.totalorder %s14, 0
    %p133 = por %p131, %p132
    %p134 = scmp.ne.s32.totalorder %s120, %s121
    %p135 = scmp.eq.s32.totalorder %s15, 11
    %p136 = por %p134, %p135
    %p138 = scmp.ne.s32.totalorder %s121, %s137
    %p139 = scmp.eq.s32.totalorder %s15, 0
    %p140 = por %p138, %p139
    %p141 = scmp.le.s32.totalorder 1, %s9
    %p142 = scmp.lt.s32.totalorder %s9, 13
    %p143 = pnand %p141, %p142
    %p144 = pneg %p143
    // Predicated region
    $region9: #{relative_mha_forward.6} parent=5 // pred_check
      _
    $region10: #{relative_mha_forward.6} parent=5 // pred_check_branch
      %146 = sbr.rel (%p143) target = $region12
    $region11: #{relative_mha_forward.6} parent=5 // pred_region
      %s147 = ssub.s32 %s9, 1
      // Predicated region
      $region13: #{relative_mha_forward.6} parent=11 // pred_check
        %p148 = pneg %p105
      $region14: #{relative_mha_forward.6} parent=11 // pred_check_branch
        %150 = sbr.rel (%p148) target = $region16
      $region15: #{relative_mha_forward.6} parent=11 // pred_region
        _
      $region16: #{relative_mha_forward.6} parent=11 // pred_fallthru
        _
    $region12: #{relative_mha_forward.6} parent=5 // pred_fallthru
      _
    %p151 = scmp.lt.s32.totalorder %s9, 12
    // Predicated region
    $region17: #{relative_mha_forward.6} parent=5 // pred_check
      %p152 = pneg %p151
    $region18: #{relative_mha_forward.6} parent=5 // pred_check_branch
      %154 = sbr.rel (%p152) target = $region20
    $region19: #{relative_mha_forward.6} parent=5 // pred_region
      // Predicated region
      $region21: #{relative_mha_forward.6} parent=19 // pred_check
        %p155 = pneg %p50
      $region22: #{relative_mha_forward.6} parent=19 // pred_check_branch
        %157 = sbr.rel (%p155) target = $region24
      $region23: #{relative_mha_forward.6} parent=19 // pred_region
        %s158 = smul.u32 8, %s17
        %p159 = scmp.lt.s32.totalorder %s16, 1
        %s160 = scalar_select %p159, %s16, 1
        %p161 = scmp.lt.s32.totalorder %s158, 15
        %s162 = scalar_select %p161, %s158, 15
        %s163 = smul.addr %s160, 16
        %s164 = sadd.s32 %s162, %s163
        %s165 = smul.addr %s164, 4
        %s166 = scalar_lea.vmem %s0, %s165
        %s167 = smul.u32 8, %s17
      $region24: #{relative_mha_forward.6} parent=19 // pred_fallthru
        _
      // Predicated region
      $region25: #{relative_mha_forward.6} parent=19 // pred_check
        %p168 = pneg %p78
      $region26: #{relative_mha_forward.6} parent=19 // pred_check_branch
        %170 = sbr.rel (%p168) target = $region28
      $region27: #{relative_mha_forward.6} parent=19 // pred_region
        %s171 = smul.u32 8, %s18
        %p172 = scmp.lt.s32.totalorder %s16, 1
        %s173 = scalar_select %p172, %s16, 1
        %p174 = scmp.lt.s32.totalorder %s171, 23
        %s175 = scalar_select %p174, %s171, 23
        %s176 = smul.addr %s173, 24
        %s177 = sadd.s32 %s175, %s176
        %s178 = smul.addr %s177, 8
        %s179 = scalar_lea.vmem %s1, %s178
        %s180 = smul.u32 8, %s18
      $region28: #{relative_mha_forward.6} parent=19 // pred_fallthru
        _
    $region20: #{relative_mha_forward.6} parent=5 // pred_fallthru
      _
    %p181 = scmp.le.s32.totalorder 1, %s9
    %p182 = scmp.lt.s32.totalorder %s9, 13
    %p183 = pnand %p181, %p182
    %p184 = pneg %p183
    // Predicated region
    $region29: #{relative_mha_forward.6} parent=5 // pred_check
      _
    $region30: #{relative_mha_forward.6} parent=5 // pred_check_branch
      %186 = sbr.rel (%p183) target = $region32
    $region31: #{relative_mha_forward.6} parent=5 // pred_region
      %s187 = ssub.s32 %s9, 1
      %s188 = smul.u32 8, %s20
      %p189 = scmp.lt.s32.totalorder %s19, 1
      %s190 = scalar_select %p189, %s19, 1
      %p191 = scmp.lt.s32.totalorder %s188, 15
      %s192 = scalar_select %p191, %s188, 15
      %s193 = smul.addr %s190, 16
      %s194 = sadd.s32 %s192, %s193
      %s195 = smul.addr %s194, 4
      %s196 = scalar_lea.vmem %s0, %s195
      %p197 = pneg %p56
      %p198 = pneg %p53
      %s199 = smul.u32 8, %s21
      %p200 = scmp.lt.s32.totalorder %s19, 1
      %s201 = scalar_select %p200, %s19, 1
      %p202 = scmp.lt.s32.totalorder %s199, 23
      %s203 = scalar_select %p202, %s199, 23
      %s204 = smul.addr %s201, 24
      %s205 = sadd.s32 %s203, %s204
      %s206 = smul.addr %s205, 8
      %s207 = scalar_lea.vmem %s1, %s206
      %p208 = pneg %p84
      %p209 = pneg %p81
      %p210 = pneg %p105
      %p211 = pneg %p102
      %p212 = pneg %p133
      %p213 = pneg %p130
      %p214 = scmp.lt.s32.totalorder %s19, 1
      %s215 = scalar_select %p214, %s19, 1
      %p216 = scmp.lt.s32.totalorder %s20, 1
      %s217 = scalar_select %p216, %s20, 1
      %s218 = smul.addr %s215, 2
      %s219 = sadd.s32 %s217, %s218
      %s220 = smul.addr %s219, 8
      %s221 = scalar_lea.vmem %s3, %s220
      %s222 = smul.u32 8, %s20
      %p223 = scmp.lt.s32.totalorder %s19, 1
      %s224 = scalar_select %p223, %s19, 1
      %p225 = scmp.lt.s32.totalorder %s222, 15
      %s226 = scalar_select %p225, %s222, 15
      %s227 = smul.addr %s224, 16
      %s228 = sadd.s32 %s226, %s227
      %s229 = smul.addr %s228, 4
      %s230 = scalar_lea.vmem %s0, %s229
      %s231 = smul.u32 8, %s20
      %s232 = smul.u32 8, %s21
      %p233 = scmp.lt.s32.totalorder %s19, 1
      %s234 = scalar_select %p233, %s19, 1
      %p235 = scmp.lt.s32.totalorder %s232, 23
      %s236 = scalar_select %p235, %s232, 23
      %s237 = smul.addr %s234, 24
      %s238 = sadd.s32 %s236, %s237
      %s239 = smul.addr %s238, 8
      %s240 = scalar_lea.vmem %s1, %s239
      %s241 = smul.u32 8, %s21
      %p242 = scmp.lt.s32.totalorder %s19, 1
      %s243 = scalar_select %p242, %s19, 1
      %p244 = scmp.lt.s32.totalorder %s20, 1
      %s245 = scalar_select %p244, %s20, 1
      %s246 = smul.addr %s243, 2
      %s247 = sadd.s32 %s245, %s246
      %s248 = smul.addr %s247, 8
      %s249 = scalar_lea.vmem %s3, %s248
      %p250 = scmp.eq.s32.totalorder %s21, 0
      // Predicated region
      $region33: #{relative_mha_forward.6} parent=31 // pred_check
        %p251 = pneg %p250
      $region34: #{relative_mha_forward.6} parent=31 // pred_check_branch
        %253 = sbr.rel (%p251) target = $region36
      $region35: #{relative_mha_forward.6} parent=31 // pred_region
        %v254 = vld [vmem:[%s230] sm:$0xf]
        %v255 = vld [vmem:[%s230 + $0x4] sm:$0xf]
        %v256 = vld [vmem:[%s230 + $0x8] sm:$0xf]
        %v257 = vld [vmem:[%s230 + $0xc] sm:$0xf]
        %v258 = vld [vmem:[%s230 + $0x10] sm:$0xf]
        %v259 = vld [vmem:[%s230 + $0x14] sm:$0xf]
        %v260 = vld [vmem:[%s230 + $0x18] sm:$0xf]
        %v261 = vld [vmem:[%s230 + $0x1c] sm:$0xf]
        %v262 = vcombine.low %v254, %v256
        %v264 = vunpack.c.l.s4 1983009808
        %v265 = vunpack.c.0.s8 %v264
        %v266 = vlaneseq
        %v267 = vshrl.u32 %v266, 7
        %v268 = vsub.s32 %v265, %v267
        %v269 = vrot.slane %v262, %v268
        %v270 = vcombine.low %v255, %v257
        %v272 = vunpack.c.l.s4 1983009808
        %v273 = vunpack.c.0.s8 %v272
        %v274 = vlaneseq
        %v275 = vshrl.u32 %v274, 7
        %v276 = vsub.s32 %v273, %v275
        %v277 = vrot.slane %v270, %v276
        %v278 = vcombine.low %v258, %v260
        %v280 = vunpack.c.l.s4 1983009808
        %v281 = vunpack.c.0.s8 %v280
        %v282 = vlaneseq
        %v283 = vshrl.u32 %v282, 7
        %v284 = vsub.s32 %v281, %v283
        %v285 = vrot.slane %v278, %v284
        %v286 = vcombine.low %v259, %v261
        %v288 = vunpack.c.l.s4 1983009808
        %v289 = vunpack.c.0.s8 %v288
        %v290 = vlaneseq
        %v291 = vshrl.u32 %v290, 7
        %v292 = vsub.s32 %v289, %v291
        %v293 = vrot.slane %v286, %v292
        %v294 = vcombine.low %v269, %v277
        %v295 = vcombine.high %v269, %v277
        %v297 = vunpack.c.l.s4 1934713408
        %v298 = vunpack.c.0.s8 %v297
        %v299 = vlaneseq
        %v300 = vshrl.u32 %v299, 7
        %v301 = vsub.s32 %v298, %v300
        %v302 = vrot.slane %v294, %v301
        %v304 = vunpack.c.l.s4 1934713408
        %v305 = vunpack.c.0.s8 %v304
        %v306 = vlaneseq
        %v307 = vshrl.u32 %v306, 7
        %v308 = vsub.s32 %v305, %v307
        %v309 = vrot.slane %v295, %v308
        %v310 = vcombine.low %v285, %v293
        %v311 = vcombine.high %v285, %v293
        %v313 = vunpack.c.l.s4 1934713408
        %v314 = vunpack.c.0.s8 %v313
        %v315 = vlaneseq
        %v316 = vshrl.u32 %v315, 7
        %v317 = vsub.s32 %v314, %v316
        %v318 = vrot.slane %v310, %v317
        %v320 = vunpack.c.l.s4 1934713408
        %v321 = vunpack.c.0.s8 %v320
        %v322 = vlaneseq
        %v323 = vshrl.u32 %v322, 7
        %v324 = vsub.s32 %v321, %v323
        %v325 = vrot.slane %v311, %v324
        %v326 = vcombine.low %v302, %v318
        %v327 = vcombine.high %v302, %v318
        %v328 = vcombine.low %v309, %v325
        %v329 = vcombine.high %v309, %v325
        %v330 = vld [vmem:[%s2] sm:$0xf]
        %v333 = vunpack.c.l.s4 1966171168
        %v334 = vunpack.c.0.s8 %v333
        %v335 = vlaneseq
        %v336 = vshrl.u32 %v335, 7
        %v337 = vsub.s32 %v334, %v336
        %v338 = vrot.slane %v330, %v337
        %v339 = vcombine.high %v338, %v338
        %v341 = vunpack.c.l.s4 1966171168
        %v342 = vunpack.c.0.s8 %v341
        %v343 = vlaneseq
        %v344 = vshrl.u32 %v343, 7
        %v345 = vsub.s32 %v342, %v344
        %v346 = vrot.slane %v338, %v345
        %v348 = vunpack.c.l.s4 1966171168
        %v349 = vunpack.c.0.s8 %v348
        %v350 = vlaneseq
        %v351 = vshrl.u32 %v350, 7
        %v352 = vsub.s32 %v349, %v351
        %v353 = vrot.slane %v339, %v352
        %v354 = vcombine.high %v346, %v346
        %v355 = vcombine.high %v353, %v353
        %v356 = vlaneseq
        %v357 = vshrl.u32 %v356, 7
        %v358 = vsub.s32 0, %v357
        %v359 = vrot.slane %v346, %v358
        %v360 = vlaneseq
        %v361 = vshrl.u32 %v360, 7
        %v362 = vsub.s32 0, %v361
        %v363 = vrot.slane %v353, %v362
        %v364 = vlaneseq
        %v365 = vshrl.u32 %v364, 7
        %v366 = vsub.s32 0, %v365
        %v367 = vrot.slane %v354, %v366
        %v368 = vlaneseq
        %v369 = vshrl.u32 %v368, 7
        %v370 = vsub.s32 0, %v369
        %v371 = vrot.slane %v355, %v370
        %v376 = vadd.f32 %v326, %v359
        %v377 = vadd.f32 %v327, %v363
        %v378 = vadd.f32 %v328, %v367
        %v379 = vadd.f32 %v329, %v371
        %vm380 = vcmask 64512
        %381 = vst.msk [vmem:[#allocation2] sm:$0xff] %vm380, %v376
        %382 = vst.msk [vmem:[#allocation2 + $0x8] sm:$0xff] %vm380, %v377
        %383 = vst.msk [vmem:[#allocation2 + $0x10] sm:$0xff] %vm380, %v378
        %384 = vst.msk [vmem:[#allocation2 + $0x18] sm:$0xff] %vm380, %v379
        %vm385 = vcmask 7168
        %386 = vst.msk [vmem:[#allocation3] sm:$0xff] %vm385, -inf
        %387 = vst.msk [vmem:[#allocation3 + $0x8] sm:$0xff] %vm385, -inf
        %388 = vst.msk [vmem:[#allocation3 + $0x10] sm:$0xff] %vm385, -inf
        %389 = vst.msk [vmem:[#allocation3 + $0x18] sm:$0xff] %vm385, -inf
        %390 = vst.msk [vmem:[#allocation4] sm:$0xff] %vm385, 0.0
        %391 = vst.msk [vmem:[#allocation4 + $0x8] sm:$0xff] %vm385, 0.0
        %392 = vst.msk [vmem:[#allocation4 + $0x10] sm:$0xff] %vm385, 0.0
        %393 = vst.msk [vmem:[#allocation4 + $0x18] sm:$0xff] %vm385, 0.0
        %394 = vst.msk [vmem:[#allocation5] sm:$0xff] %vm380, 0.0
        %395 = vst.msk [vmem:[#allocation5 + $0x8] sm:$0xff] %vm380, 0.0
        %396 = vst.msk [vmem:[#allocation5 + $0x10] sm:$0xff] %vm380, 0.0
        %397 = vst.msk [vmem:[#allocation5 + $0x18] sm:$0xff] %vm380, 0.0
      $region36: #{relative_mha_forward.6} parent=31 // pred_fallthru
        _
      %v398 = vld [vmem:[%s240] sm:$0xff]
      %v399 = vld [vmem:[%s240 + $0x8] sm:$0xff]
      %v400 = vld [vmem:[%s240 + $0x10] sm:$0xff]
      %v401 = vld [vmem:[%s240 + $0x18] sm:$0xff]
      %v402 = vld [vmem:[%s240 + $0x20] sm:$0xff]
      %v403 = vld [vmem:[%s240 + $0x28] sm:$0xff]
      %v404 = vld [vmem:[%s240 + $0x30] sm:$0xff]
      %v405 = vld [vmem:[%s240 + $0x38] sm:$0xff]
      %v406 = vcombine.low %v398, %v400
      %v407 = vcombine.high %v398, %v400
      %v409 = vunpack.c.l.s4 1983009808
      %v410 = vunpack.c.0.s8 %v409
      %v411 = vlaneseq
      %v412 = vshrl.u32 %v411, 7
      %v413 = vsub.s32 %v410, %v412
      %v414 = vrot.slane %v406, %v413
      %v416 = vunpack.c.l.s4 1983009808
      %v417 = vunpack.c.0.s8 %v416
      %v418 = vlaneseq
      %v419 = vshrl.u32 %v418, 7
      %v420 = vsub.s32 %v417, %v419
      %v421 = vrot.slane %v407, %v420
      %v422 = vcombine.low %v399, %v401
      %v423 = vcombine.high %v399, %v401
      %v425 = vunpack.c.l.s4 1983009808
      %v426 = vunpack.c.0.s8 %v425
      %v427 = vlaneseq
      %v428 = vshrl.u32 %v427, 7
      %v429 = vsub.s32 %v426, %v428
      %v430 = vrot.slane %v422, %v429
      %v432 = vunpack.c.l.s4 1983009808
      %v433 = vunpack.c.0.s8 %v432
      %v434 = vlaneseq
      %v435 = vshrl.u32 %v434, 7
      %v436 = vsub.s32 %v433, %v435
      %v437 = vrot.slane %v423, %v436
      %v438 = vcombine.low %v402, %v404
      %v439 = vcombine.high %v402, %v404
      %v441 = vunpack.c.l.s4 1983009808
      %v442 = vunpack.c.0.s8 %v441
      %v443 = vlaneseq
      %v444 = vshrl.u32 %v443, 7
      %v445 = vsub.s32 %v442, %v444
      %v446 = vrot.slane %v438, %v445
      %v448 = vunpack.c.l.s4 1983009808
      %v449 = vunpack.c.0.s8 %v448
      %v450 = vlaneseq
      %v451 = vshrl.u32 %v450, 7
      %v452 = vsub.s32 %v449, %v451
      %v453 = vrot.slane %v439, %v452
      %v454 = vcombine.low %v403, %v405
      %v455 = vcombine.high %v403, %v405
      %v457 = vunpack.c.l.s4 1983009808
      %v458 = vunpack.c.0.s8 %v457
      %v459 = vlaneseq
      %v460 = vshrl.u32 %v459, 7
      %v461 = vsub.s32 %v458, %v460
      %v462 = vrot.slane %v454, %v461
      %v464 = vunpack.c.l.s4 1983009808
      %v465 = vunpack.c.0.s8 %v464
      %v466 = vlaneseq
      %v467 = vshrl.u32 %v466, 7
      %v468 = vsub.s32 %v465, %v467
      %v469 = vrot.slane %v455, %v468
      %v470 = vcombine.low %v414, %v430
      %v471 = vcombine.high %v414, %v430
      %v473 = vunpack.c.l.s4 1934713408
      %v474 = vunpack.c.0.s8 %v473
      %v475 = vlaneseq
      %v476 = vshrl.u32 %v475, 7
      %v477 = vsub.s32 %v474, %v476
      %v478 = vrot.slane %v470, %v477
      %v480 = vunpack.c.l.s4 1934713408
      %v481 = vunpack.c.0.s8 %v480
      %v482 = vlaneseq
      %v483 = vshrl.u32 %v482, 7
      %v484 = vsub.s32 %v481, %v483
      %v485 = vrot.slane %v471, %v484
      %v486 = vcombine.low %v421, %v437
      %v487 = vcombine.high %v421, %v437
      %v489 = vunpack.c.l.s4 1934713408
      %v490 = vunpack.c.0.s8 %v489
      %v491 = vlaneseq
      %v492 = vshrl.u32 %v491, 7
      %v493 = vsub.s32 %v490, %v492
      %v494 = vrot.slane %v486, %v493
      %v496 = vunpack.c.l.s4 1934713408
      %v497 = vunpack.c.0.s8 %v496
      %v498 = vlaneseq
      %v499 = vshrl.u32 %v498, 7
      %v500 = vsub.s32 %v497, %v499
      %v501 = vrot.slane %v487, %v500
      %v502 = vcombine.low %v446, %v462
      %v503 = vcombine.high %v446, %v462
      %v505 = vunpack.c.l.s4 1934713408
      %v506 = vunpack.c.0.s8 %v505
      %v507 = vlaneseq
      %v508 = vshrl.u32 %v507, 7
      %v509 = vsub.s32 %v506, %v508
      %v510 = vrot.slane %v502, %v509
      %v512 = vunpack.c.l.s4 1934713408
      %v513 = vunpack.c.0.s8 %v512
      %v514 = vlaneseq
      %v515 = vshrl.u32 %v514, 7
      %v516 = vsub.s32 %v513, %v515
      %v517 = vrot.slane %v503, %v516
      %v518 = vcombine.low %v453, %v469
      %v519 = vcombine.high %v453, %v469
      %v521 = vunpack.c.l.s4 1934713408
      %v522 = vunpack.c.0.s8 %v521
      %v523 = vlaneseq
      %v524 = vshrl.u32 %v523, 7
      %v525 = vsub.s32 %v522, %v524
      %v526 = vrot.slane %v518, %v525
      %v528 = vunpack.c.l.s4 1934713408
      %v529 = vunpack.c.0.s8 %v528
      %v530 = vlaneseq
      %v531 = vshrl.u32 %v530, 7
      %v532 = vsub.s32 %v529, %v531
      %v533 = vrot.slane %v519, %v532
      %v534 = vcombine.low %v478, %v510
      %v535 = vcombine.high %v478, %v510
      %v536 = vcombine.low %v485, %v517
      %v537 = vcombine.high %v485, %v517
      %v538 = vcombine.low %v494, %v526
      %v539 = vcombine.high %v494, %v526
      %v540 = vcombine.low %v501, %v533
      %v541 = vcombine.high %v501, %v533
      %v542 = vld [vmem:[#allocation2] sm:$0xff]
      %v543 = vld [vmem:[#allocation2 + $0x8] sm:$0xff]
      %v544 = vld [vmem:[#allocation2 + $0x10] sm:$0xff]
      %v545 = vld [vmem:[#allocation2 + $0x18] sm:$0xff]
      %vm546 = vcmask 64512
      %v548 = vsel %vm546, %v542, 0
      %v551 = vsel %vm546, %v534, 0
      %553 = vmatprep.subr.mxu0 0.0
      %554 = vmatpush1.xpose.msra.mxu0 0.0
      %555 = vmatprep.subr.mxu0 0.0
      %556 = vmatpush1.xpose.msra.mxu0 0.0
      %557 = vmatprep.subr.mxu0 0.0
      %558 = vmatpush1.xpose.msra.mxu0 0.0
      %559 = vmatprep.subr.mxu0 0.0
      %560 = vmatpush1.xpose.msra.mxu0 0.0
      %561 = vmatprep.subr.mxu0 0.0
      %562 = vmatpush1.xpose.msra.mxu0 0.0
      %563 = vmatprep.subr.mxu0 0.0
      %564 = vmatpush1.xpose.msra.mxu0 0.0
      %565 = vmatprep.subr.mxu0 0.0
      %566 = vmatpush1.xpose.msra.mxu0 0.0
      %567 = vmatprep.subr.mxu0 0.0
      %568 = vmatpush1.xpose.msra.mxu0 0.0
      %569 = vmatprep.subr.mxu0 0.0
      %570 = vmatpush1.xpose.msra.mxu0 0.0
      %571 = vmatprep.subr.mxu0 0.0
      %572 = vmatpush1.xpose.msra.mxu0 0.0
      %573 = vmatprep.subr.mxu0 0.0
      %574 = vmatpush1.xpose.msra.mxu0 0.0
      %575 = vmatprep.subr.mxu0 0.0
      %576 = vmatpush1.xpose.msra.mxu0 0.0
      %577 = vmatprep.subr.mxu0 0.0
      %578 = vmatpush1.xpose.msra.mxu0 0.0
      %579 = vmatprep.subr.mxu0 0.0
      %580 = vmatpush1.xpose.msra.mxu0 0.0
      %581 = vmatprep.subr.mxu0 0.0
      %582 = vmatpush1.xpose.msra.mxu0 0.0
      %583 = vmatprep.subr.mxu0 0.0
      %584 = vmatpush1.xpose.msra.mxu0 %v551
      %585 = vmatprep.subr.mxu0 0.0
      %586 = vmatpush2.xpose.msra.mxu0 0.0
      %587 = vmatprep.subr.mxu0 0.0
      %588 = vmatpush2.xpose.msra.mxu0 0.0
      %589 = vmatprep.subr.mxu0 0.0
      %590 = vmatpush2.xpose.msra.mxu0 0.0
      %591 = vmatprep.subr.mxu0 0.0
      %592 = vmatpush2.xpose.msra.mxu0 0.0
      %593 = vmatprep.subr.mxu0 0.0
      %594 = vmatpush2.xpose.msra.mxu0 0.0
      %595 = vmatprep.subr.mxu0 0.0
      %596 = vmatpush2.xpose.msra.mxu0 0.0
      %597 = vmatprep.subr.mxu0 0.0
      %598 = vmatpush2.xpose.msra.mxu0 0.0
      %599 = vmatprep.subr.mxu0 0.0
      %600 = vmatpush2.xpose.msra.mxu0 0.0
      %601 = vmatprep.subr.mxu0 0.0
      %602 = vmatpush2.xpose.msra.mxu0 0.0
      %603 = vmatprep.subr.mxu0 0.0
      %604 = vmatpush2.xpose.msra.mxu0 0.0
      %605 = vmatprep.subr.mxu0 0.0
      %606 = vmatpush2.xpose.msra.mxu0 0.0
      %607 = vmatprep.subr.mxu0 0.0
      %608 = vmatpush2.xpose.msra.mxu0 0.0
      %609 = vmatprep.subr.mxu0 0.0
      %610 = vmatpush2.xpose.msra.mxu0 0.0
      %611 = vmatprep.subr.mxu0 0.0
      %612 = vmatpush2.xpose.msra.mxu0 0.0
      %613 = vmatprep.subr.mxu0 0.0
      %614 = vmatpush2.xpose.msra.mxu0 0.0
      %615 = vmatprep.subr.mxu0 0.0
      %616 = vmatpush2.xpose.msra.mxu0 0.0
      %617 = vmatprep.mubr.f32.mxu0 0.0
      %618 = vmatmul.mubr.f32.gmra.mxu0 %v548
      %v619 = vpop.f32.mrf.mxu0
      %v620 = vadd.f32 0.0, %v619
      %v621 = vpop.f32.mrf.mxu0
      %622 = vdwg.mxu0
      %v624 = vsel %vm546, %v543, 0
      %v627 = vsel %vm546, %v535, 0
      %629 = vmatprep.subr.mxu0 0.0
      %630 = vmatpush1.xpose.msra.mxu0 0.0
      %631 = vmatprep.subr.mxu0 0.0
      %632 = vmatpush1.xpose.msra.mxu0 0.0
      %633 = vmatprep.subr.mxu0 0.0
      %634 = vmatpush1.xpose.msra.mxu0 0.0
      %635 = vmatprep.subr.mxu0 0.0
      %636 = vmatpush1.xpose.msra.mxu0 0.0
      %637 = vmatprep.subr.mxu0 0.0
      %638 = vmatpush1.xpose.msra.mxu0 0.0
      %639 = vmatprep.subr.mxu0 0.0
      %640 = vmatpush1.xpose.msra.mxu0 0.0
      %641 = vmatprep.subr.mxu0 0.0
      %642 = vmatpush1.xpose.msra.mxu0 0.0
      %643 = vmatprep.subr.mxu0 0.0
      %644 = vmatpush1.xpose.msra.mxu0 0.0
      %645 = vmatprep.subr.mxu0 0.0
      %646 = vmatpush1.xpose.msra.mxu0 0.0
      %647 = vmatprep.subr.mxu0 0.0
      %648 = vmatpush1.xpose.msra.mxu0 0.0
      %649 = vmatprep.subr.mxu0 0.0
      %650 = vmatpush1.xpose.msra.mxu0 0.0
      %651 = vmatprep.subr.mxu0 0.0
      %652 = vmatpush1.xpose.msra.mxu0 0.0
      %653 = vmatprep.subr.mxu0 0.0
      %654 = vmatpush1.xpose.msra.mxu0 0.0
      %655 = vmatprep.subr.mxu0 0.0
      %656 = vmatpush1.xpose.msra.mxu0 0.0
      %657 = vmatprep.subr.mxu0 0.0
      %658 = vmatpush1.xpose.msra.mxu0 0.0
      %659 = vmatprep.subr.mxu0 0.0
      %660 = vmatpush1.xpose.msra.mxu0 %v627
      %661 = vmatprep.subr.mxu0 0.0
      %662 = vmatpush2.xpose.msra.mxu0 0.0
      %663 = vmatprep.subr.mxu0 0.0
      %664 = vmatpush2.xpose.msra.mxu0 0.0
      %665 = vmatprep.subr.mxu0 0.0
      %666 = vmatpush2.xpose.msra.mxu0 0.0
      %667 = vmatprep.subr.mxu0 0.0
      %668 = vmatpush2.xpose.msra.mxu0 0.0
      %669 = vmatprep.subr.mxu0 0.0
      %670 = vmatpush2.xpose.msra.mxu0 0.0
      %671 = vmatprep.subr.mxu0 0.0
      %672 = vmatpush2.xpose.msra.mxu0 0.0
      %673 = vmatprep.subr.mxu0 0.0
      %674 = vmatpush2.xpose.msra.mxu0 0.0
      %675 = vmatprep.subr.mxu0 0.0
      %676 = vmatpush2.xpose.msra.mxu0 0.0
      %677 = vmatprep.subr.mxu0 0.0
      %678 = vmatpush2.xpose.msra.mxu0 0.0
      %679 = vmatprep.subr.mxu0 0.0
      %680 = vmatpush2.xpose.msra.mxu0 0.0
      %681 = vmatprep.subr.mxu0 0.0
      %682 = vmatpush2.xpose.msra.mxu0 0.0
      %683 = vmatprep.subr.mxu0 0.0
      %684 = vmatpush2.xpose.msra.mxu0 0.0
      %685 = vmatprep.subr.mxu0 0.0
      %686 = vmatpush2.xpose.msra.mxu0 0.0
      %687 = vmatprep.subr.mxu0 0.0
      %688 = vmatpush2.xpose.msra.mxu0 0.0
      %689 = vmatprep.subr.mxu0 0.0
      %690 = vmatpush2.xpose.msra.mxu0 0.0
      %691 = vmatprep.subr.mxu0 0.0
      %692 = vmatpush2.xpose.msra.mxu0 0.0
      %693 = vmatprep.mubr.f32.mxu0 0.0
      %694 = vmatmul.mubr.f32.gmra.mxu0 %v624
      %v695 = vpop.f32.mrf.mxu0
      %v696 = vadd.f32 0.0, %v695
      %v697 = vpop.f32.mrf.mxu0
      %698 = vdwg.mxu0
      %v700 = vsel %vm546, %v544, 0
      %v703 = vsel %vm546, %v536, 0
      %705 = vmatprep.subr.mxu0 0.0
      %706 = vmatpush1.xpose.msra.mxu0 0.0
      %707 = vmatprep.subr.mxu0 0.0
      %708 = vmatpush1.xpose.msra.mxu0 0.0
      %709 = vmatprep.subr.mxu0 0.0
      %710 = vmatpush1.xpose.msra.mxu0 0.0
      %711 = vmatprep.subr.mxu0 0.0
      %712 = vmatpush1.xpose.msra.mxu0 0.0
      %713 = vmatprep.subr.mxu0 0.0
      %714 = vmatpush1.xpose.msra.mxu0 0.0
      %715 = vmatprep.subr.mxu0 0.0
      %716 = vmatpush1.xpose.msra.mxu0 0.0
      %717 = vmatprep.subr.mxu0 0.0
      %718 = vmatpush1.xpose.msra.mxu0 0.0
      %719 = vmatprep.subr.mxu0 0.0
      %720 = vmatpush1.xpose.msra.mxu0 0.0
      %721 = vmatprep.subr.mxu0 0.0
      %722 = vmatpush1.xpose.msra.mxu0 0.0
      %723 = vmatprep.subr.mxu0 0.0
      %724 = vmatpush1.xpose.msra.mxu0 0.0
      %725 = vmatprep.subr.mxu0 0.0
      %726 = vmatpush1.xpose.msra.mxu0 0.0
      %727 = vmatprep.subr.mxu0 0.0
      %728 = vmatpush1.xpose.msra.mxu0 0.0
      %729 = vmatprep.subr.mxu0 0.0
      %730 = vmatpush1.xpose.msra.mxu0 0.0
      %731 = vmatprep.subr.mxu0 0.0
      %732 = vmatpush1.xpose.msra.mxu0 0.0
      %733 = vmatprep.subr.mxu0 0.0
      %734 = vmatpush1.xpose.msra.mxu0 0.0
      %735 = vmatprep.subr.mxu0 0.0
      %736 = vmatpush1.xpose.msra.mxu0 %v703
      %737 = vmatprep.subr.mxu0 0.0
      %738 = vmatpush2.xpose.msra.mxu0 0.0
      %739 = vmatprep.subr.mxu0 0.0
      %740 = vmatpush2.xpose.msra.mxu0 0.0
      %741 = vmatprep.subr.mxu0 0.0
      %742 = vmatpush2.xpose.msra.mxu0 0.0
      %743 = vmatprep.subr.mxu0 0.0
      %744 = vmatpush2.xpose.msra.mxu0 0.0
      %745 = vmatprep.subr.mxu0 0.0
      %746 = vmatpush2.xpose.msra.mxu0 0.0
      %747 = vmatprep.subr.mxu0 0.0
      %748 = vmatpush2.xpose.msra.mxu0 0.0
      %749 = vmatprep.subr.mxu0 0.0
      %750 = vmatpush2.xpose.msra.mxu0 0.0
      %751 = vmatprep.subr.mxu0 0.0
      %752 = vmatpush2.xpose.msra.mxu0 0.0
      %753 = vmatprep.subr.mxu0 0.0
      %754 = vmatpush2.xpose.msra.mxu0 0.0
      %755 = vmatprep.subr.mxu0 0.0
      %756 = vmatpush2.xpose.msra.mxu0 0.0
      %757 = vmatprep.subr.mxu0 0.0
      %758 = vmatpush2.xpose.msra.mxu0 0.0
      %759 = vmatprep.subr.mxu0 0.0
      %760 = vmatpush2.xpose.msra.mxu0 0.0
      %761 = vmatprep.subr.mxu0 0.0
      %762 = vmatpush2.xpose.msra.mxu0 0.0
      %763 = vmatprep.subr.mxu0 0.0
      %764 = vmatpush2.xpose.msra.mxu0 0.0
      %765 = vmatprep.subr.mxu0 0.0
      %766 = vmatpush2.xpose.msra.mxu0 0.0
      %767 = vmatprep.subr.mxu0 0.0
      %768 = vmatpush2.xpose.msra.mxu0 0.0
      %769 = vmatprep.mubr.f32.mxu0 0.0
      %770 = vmatmul.mubr.f32.gmra.mxu0 %v700
      %v771 = vpop.f32.mrf.mxu0
      %v772 = vadd.f32 0.0, %v771
      %v773 = vpop.f32.mrf.mxu0
      %774 = vdwg.mxu0
      %v776 = vsel %vm546, %v545, 0
      %v779 = vsel %vm546, %v537, 0
      %781 = vmatprep.subr.mxu0 0.0
      %782 = vmatpush1.xpose.msra.mxu0 0.0
      %783 = vmatprep.subr.mxu0 0.0
      %784 = vmatpush1.xpose.msra.mxu0 0.0
      %785 = vmatprep.subr.mxu0 0.0
      %786 = vmatpush1.xpose.msra.mxu0 0.0
      %787 = vmatprep.subr.mxu0 0.0
      %788 = vmatpush1.xpose.msra.mxu0 0.0
      %789 = vmatprep.subr.mxu0 0.0
      %790 = vmatpush1.xpose.msra.mxu0 0.0
      %791 = vmatprep.subr.mxu0 0.0
      %792 = vmatpush1.xpose.msra.mxu0 0.0
      %793 = vmatprep.subr.mxu0 0.0
      %794 = vmatpush1.xpose.msra.mxu0 0.0
      %795 = vmatprep.subr.mxu0 0.0
      %796 = vmatpush1.xpose.msra.mxu0 0.0
      %797 = vmatprep.subr.mxu0 0.0
      %798 = vmatpush1.xpose.msra.mxu0 0.0
      %799 = vmatprep.subr.mxu0 0.0
      %800 = vmatpush1.xpose.msra.mxu0 0.0
      %801 = vmatprep.subr.mxu0 0.0
      %802 = vmatpush1.xpose.msra.mxu0 0.0
      %803 = vmatprep.subr.mxu0 0.0
      %804 = vmatpush1.xpose.msra.mxu0 0.0
      %805 = vmatprep.subr.mxu0 0.0
      %806 = vmatpush1.xpose.msra.mxu0 0.0
      %807 = vmatprep.subr.mxu0 0.0
      %808 = vmatpush1.xpose.msra.mxu0 0.0
      %809 = vmatprep.subr.mxu0 0.0
      %810 = vmatpush1.xpose.msra.mxu0 0.0
      %811 = vmatprep.subr.mxu0 0.0
      %812 = vmatpush1.xpose.msra.mxu0 %v779
      %813 = vmatprep.subr.mxu0 0.0
      %814 = vmatpush2.xpose.msra.mxu0 0.0
      %815 = vmatprep.subr.mxu0 0.0
      %816 = vmatpush2.xpose.msra.mxu0 0.0
      %817 = vmatprep.subr.mxu0 0.0
      %818 = vmatpush2.xpose.msra.mxu0 0.0
      %819 = vmatprep.subr.mxu0 0.0
      %820 = vmatpush2.xpose.msra.mxu0 0.0
      %821 = vmatprep.subr.mxu0 0.0
      %822 = vmatpush2.xpose.msra.mxu0 0.0
      %823 = vmatprep.subr.mxu0 0.0
      %824 = vmatpush2.xpose.msra.mxu0 0.0
      %825 = vmatprep.subr.mxu0 0.0
      %826 = vmatpush2.xpose.msra.mxu0 0.0
      %827 = vmatprep.subr.mxu0 0.0
      %828 = vmatpush2.xpose.msra.mxu0 0.0
      %829 = vmatprep.subr.mxu0 0.0
      %830 = vmatpush2.xpose.msra.mxu0 0.0
      %831 = vmatprep.subr.mxu0 0.0
      %832 = vmatpush2.xpose.msra.mxu0 0.0
      %833 = vmatprep.subr.mxu0 0.0
      %834 = vmatpush2.xpose.msra.mxu0 0.0
      %835 = vmatprep.subr.mxu0 0.0
      %836 = vmatpush2.xpose.msra.mxu0 0.0
      %837 = vmatprep.subr.mxu0 0.0
      %838 = vmatpush2.xpose.msra.mxu0 0.0
      %839 = vmatprep.subr.mxu0 0.0
      %840 = vmatpush2.xpose.msra.mxu0 0.0
      %841 = vmatprep.subr.mxu0 0.0
      %842 = vmatpush2.xpose.msra.mxu0 0.0
      %843 = vmatprep.subr.mxu0 0.0
      %844 = vmatpush2.xpose.msra.mxu0 0.0
      %845 = vmatprep.mubr.f32.mxu0 0.0
      %846 = vmatmul.mubr.f32.gmra.mxu0 %v776
      %v847 = vpop.f32.mrf.mxu0
      %v848 = vadd.f32 0.0, %v847
      %v849 = vpop.f32.mrf.mxu0
      %850 = vdwg.mxu0
      %v851 = vld [vmem:[#allocation3] sm:$0xff]
      %v852 = vld [vmem:[#allocation3 + $0x8] sm:$0xff]
      %v853 = vld [vmem:[#allocation3 + $0x10] sm:$0xff]
      %v854 = vld [vmem:[#allocation3 + $0x18] sm:$0xff]
      %v855 = vsel %vm546, %v620, -inf
      %856 = vmax.xlane.f32.xlu0 %v855
      %v857 = vpop.xlane.xlu0 %856
      %v858 = vsel %vm546, %v696, -inf
      %859 = vmax.xlane.f32.xlu0 %v858
      %v860 = vpop.xlane.xlu0 %859
      %v861 = vsel %vm546, %v772, -inf
      %862 = vmax.xlane.f32.xlu0 %v861
      %v863 = vpop.xlane.xlu0 %862
      %v864 = vsel %vm546, %v848, -inf
      %865 = vmax.xlane.f32.xlu0 %v864
      %v866 = vpop.xlane.xlu0 %865
      %v867 = vmax.f32 %v851, %v857
      %v868 = vmax.f32 %v852, %v860
      %v869 = vmax.f32 %v853, %v863
      %v870 = vmax.f32 %v854, %v866
      %v871 = vsub.f32 %v851, %v867
      %v872 = vsub.f32 %v852, %v868
      %v873 = vsub.f32 %v853, %v869
      %v874 = vsub.f32 %v854, %v870
      %v875 = vmul.f32 %v871, 1.442695
      %v876 = vpow.pop %v875
      %v877 = vmul.f32 %v872, 1.442695
      %v878 = vpow.pop %v877
      %v879 = vmul.f32 %v873, 1.442695
      %v880 = vpow.pop %v879
      %v881 = vmul.f32 %v874, 1.442695
      %v882 = vpow.pop %v881
      %884 = vset.pattern.permute.xlu0 0
      %885 = vperm.xlu0 %884, %v867
      %v886 = vpop.permute.xlu0 %885
      %889 = vset.pattern.permute.xlu0 0
      %890 = vperm.xlu0 %889, %v868
      %v891 = vpop.permute.xlu0 %890
      %894 = vset.pattern.permute.xlu0 0
      %895 = vperm.xlu0 %894, %v869
      %v896 = vpop.permute.xlu0 %895
      %899 = vset.pattern.permute.xlu0 0
      %900 = vperm.xlu0 %899, %v870
      %v901 = vpop.permute.xlu0 %900
      %v903 = vsub.f32 %v620, %v886
      %v904 = vsub.f32 %v696, %v891
      %v905 = vsub.f32 %v772, %v896
      %v906 = vsub.f32 %v848, %v901
      %v907 = vmul.f32 %v903, 1.442695
      %v908 = vpow.pop %v907
      %v909 = vmul.f32 %v904, 1.442695
      %v910 = vpow.pop %v909
      %v911 = vmul.f32 %v905, 1.442695
      %v912 = vpow.pop %v911
      %v913 = vmul.f32 %v906, 1.442695
      %v914 = vpow.pop %v913
      %v915 = vld [vmem:[#allocation4] sm:$0xff]
      %v916 = vld [vmem:[#allocation4 + $0x8] sm:$0xff]
      %v917 = vld [vmem:[#allocation4 + $0x10] sm:$0xff]
      %v918 = vld [vmem:[#allocation4 + $0x18] sm:$0xff]
      %v919 = vmul.f32 %v876, %v915
      %v920 = vmul.f32 %v878, %v916
      %v921 = vmul.f32 %v880, %v917
      %v922 = vmul.f32 %v882, %v918
      %v923 = vsel %vm546, %v908, 0.0
      %924 = vadd.xlane.f32.xlu0 %v923
      %v925 = vpop.xlane.xlu0 %924
      %v926 = vsel %vm546, %v910, 0.0
      %927 = vadd.xlane.f32.xlu0 %v926
      %v928 = vpop.xlane.xlu0 %927
      %v929 = vsel %vm546, %v912, 0.0
      %930 = vadd.xlane.f32.xlu0 %v929
      %v931 = vpop.xlane.xlu0 %930
      %v932 = vsel %vm546, %v914, 0.0
      %933 = vadd.xlane.f32.xlu0 %v932
      %v934 = vpop.xlane.xlu0 %933
      %v935 = vadd.f32 %v919, %v925
      %v936 = vadd.f32 %v920, %v928
      %v937 = vadd.f32 %v921, %v931
      %v938 = vadd.f32 %v922, %v934
      %vm939 = vcmask 7168
      %940 = vst.msk [vmem:[#allocation4] sm:$0xff] %vm939, %v935
      %941 = vst.msk [vmem:[#allocation4 + $0x8] sm:$0xff] %vm939, %v936
      %942 = vst.msk [vmem:[#allocation4 + $0x10] sm:$0xff] %vm939, %v937
      %943 = vst.msk [vmem:[#allocation4 + $0x18] sm:$0xff] %vm939, %v938
      %v944 = vld [vmem:[#allocation5] sm:$0xff]
      %v945 = vld [vmem:[#allocation5 + $0x8] sm:$0xff]
      %v946 = vld [vmem:[#allocation5 + $0x10] sm:$0xff]
      %v947 = vld [vmem:[#allocation5 + $0x18] sm:$0xff]
      %949 = vset.pattern.permute.xlu0 0
      %950 = vperm.xlu0 %949, %v876
      %v951 = vpop.permute.xlu0 %950
      %954 = vset.pattern.permute.xlu0 0
      %955 = vperm.xlu0 %954, %v878
      %v956 = vpop.permute.xlu0 %955
      %959 = vset.pattern.permute.xlu0 0
      %960 = vperm.xlu0 %959, %v880
      %v961 = vpop.permute.xlu0 %960
      %964 = vset.pattern.permute.xlu0 0
      %965 = vperm.xlu0 %964, %v882
      %v966 = vpop.permute.xlu0 %965
      %v968 = vmul.f32 %v951, %v944
      %v969 = vmul.f32 %v956, %v945
      %v970 = vmul.f32 %v961, %v946
      %v971 = vmul.f32 %v966, %v947
      %v973 = vsel %vm546, %v908, 0
      %975 = vmatprep.subr.mxu0 0.0
      %976 = vmatpush1.msra.mxu0 0.0
      %977 = vmatprep.subr.mxu0 0.0
      %978 = vmatpush1.msra.mxu0 0.0
      %979 = vmatprep.subr.mxu0 0.0
      %980 = vmatpush1.msra.mxu0 0.0
      %981 = vmatprep.subr.mxu0 0.0
      %982 = vmatpush1.msra.mxu0 0.0
      %983 = vmatprep.subr.mxu0 0.0
      %984 = vmatpush1.msra.mxu0 0.0
      %985 = vmatprep.subr.mxu0 0.0
      %986 = vmatpush1.msra.mxu0 0.0
      %987 = vmatprep.subr.mxu0 0.0
      %988 = vmatpush1.msra.mxu0 0.0
      %989 = vmatprep.subr.mxu0 0.0
      %990 = vmatpush1.msra.mxu0 0.0
      %991 = vmatprep.subr.mxu0 0.0
      %992 = vmatpush1.msra.mxu0 0.0
      %993 = vmatprep.subr.mxu0 0.0
      %994 = vmatpush1.msra.mxu0 0.0
      %995 = vmatprep.subr.mxu0 0.0
      %996 = vmatpush1.msra.mxu0 0.0
      %997 = vmatprep.subr.mxu0 0.0
      %998 = vmatpush1.msra.mxu0 0.0
      %999 = vmatprep.subr.mxu0 0.0
      %1000 = vmatpush1.msra.mxu0 0.0
      %1001 = vmatprep.subr.mxu0 0.0
      %1002 = vmatpush1.msra.mxu0 0.0
      %1003 = vmatprep.subr.mxu0 0.0
      %1004 = vmatpush1.msra.mxu0 0.0
      %1005 = vmatprep.subr.mxu0 0.0
      %1006 = vmatpush1.msra.mxu0 %v538
      %1007 = vmatprep.subr.mxu0 0.0
      %1008 = vmatpush2.msra.mxu0 0.0
      %1009 = vmatprep.subr.mxu0 0.0
      %1010 = vmatpush2.msra.mxu0 0.0
      %1011 = vmatprep.subr.mxu0 0.0
      %1012 = vmatpush2.msra.mxu0 0.0
      %1013 = vmatprep.subr.mxu0 0.0
      %1014 = vmatpush2.msra.mxu0 0.0
      %1015 = vmatprep.subr.mxu0 0.0
      %1016 = vmatpush2.msra.mxu0 0.0
      %1017 = vmatprep.subr.mxu0 0.0
      %1018 = vmatpush2.msra.mxu0 0.0
      %1019 = vmatprep.subr.mxu0 0.0
      %1020 = vmatpush2.msra.mxu0 0.0
      %1021 = vmatprep.subr.mxu0 0.0
      %1022 = vmatpush2.msra.mxu0 0.0
      %1023 = vmatprep.subr.mxu0 0.0
      %1024 = vmatpush2.msra.mxu0 0.0
      %1025 = vmatprep.subr.mxu0 0.0
      %1026 = vmatpush2.msra.mxu0 0.0
      %1027 = vmatprep.subr.mxu0 0.0
      %1028 = vmatpush2.msra.mxu0 0.0
      %1029 = vmatprep.subr.mxu0 0.0
      %1030 = vmatpush2.msra.mxu0 0.0
      %1031 = vmatprep.subr.mxu0 0.0
      %1032 = vmatpush2.msra.mxu0 0.0
      %1033 = vmatprep.subr.mxu0 0.0
      %1034 = vmatpush2.msra.mxu0 0.0
      %1035 = vmatprep.subr.mxu0 0.0
      %1036 = vmatpush2.msra.mxu0 0.0
      %1037 = vmatprep.subr.mxu0 0.0
      %1038 = vmatpush2.msra.mxu0 0.0
      %1039 = vmatprep.mubr.f32.mxu0 0.0
      %1040 = vmatmul.mubr.f32.gmra.mxu0 %v973
      %v1041 = vpop.f32.mrf.mxu0
      %v1042 = vadd.f32 0.0, %v1041
      %v1043 = vpop.f32.mrf.mxu0
      %1044 = vdwg.mxu0
      %v1046 = vsel %vm546, %v910, 0
      %1048 = vmatprep.subr.mxu0 0.0
      %1049 = vmatpush1.msra.mxu0 0.0
      %1050 = vmatprep.subr.mxu0 0.0
      %1051 = vmatpush1.msra.mxu0 0.0
      %1052 = vmatprep.subr.mxu0 0.0
      %1053 = vmatpush1.msra.mxu0 0.0
      %1054 = vmatprep.subr.mxu0 0.0
      %1055 = vmatpush1.msra.mxu0 0.0
      %1056 = vmatprep.subr.mxu0 0.0
      %1057 = vmatpush1.msra.mxu0 0.0
      %1058 = vmatprep.subr.mxu0 0.0
      %1059 = vmatpush1.msra.mxu0 0.0
      %1060 = vmatprep.subr.mxu0 0.0
      %1061 = vmatpush1.msra.mxu0 0.0
      %1062 = vmatprep.subr.mxu0 0.0
      %1063 = vmatpush1.msra.mxu0 0.0
      %1064 = vmatprep.subr.mxu0 0.0
      %1065 = vmatpush1.msra.mxu0 0.0
      %1066 = vmatprep.subr.mxu0 0.0
      %1067 = vmatpush1.msra.mxu0 0.0
      %1068 = vmatprep.subr.mxu0 0.0
      %1069 = vmatpush1.msra.mxu0 0.0
      %1070 = vmatprep.subr.mxu0 0.0
      %1071 = vmatpush1.msra.mxu0 0.0
      %1072 = vmatprep.subr.mxu0 0.0
      %1073 = vmatpush1.msra.mxu0 0.0
      %1074 = vmatprep.subr.mxu0 0.0
      %1075 = vmatpush1.msra.mxu0 0.0
      %1076 = vmatprep.subr.mxu0 0.0
      %1077 = vmatpush1.msra.mxu0 0.0
      %1078 = vmatprep.subr.mxu0 0.0
      %1079 = vmatpush1.msra.mxu0 %v539
      %1080 = vmatprep.subr.mxu0 0.0
      %1081 = vmatpush2.msra.mxu0 0.0
      %1082 = vmatprep.subr.mxu0 0.0
      %1083 = vmatpush2.msra.mxu0 0.0
      %1084 = vmatprep.subr.mxu0 0.0
      %1085 = vmatpush2.msra.mxu0 0.0
      %1086 = vmatprep.subr.mxu0 0.0
      %1087 = vmatpush2.msra.mxu0 0.0
      %1088 = vmatprep.subr.mxu0 0.0
      %1089 = vmatpush2.msra.mxu0 0.0
      %1090 = vmatprep.subr.mxu0 0.0
      %1091 = vmatpush2.msra.mxu0 0.0
      %1092 = vmatprep.subr.mxu0 0.0
      %1093 = vmatpush2.msra.mxu0 0.0
      %1094 = vmatprep.subr.mxu0 0.0
      %1095 = vmatpush2.msra.mxu0 0.0
      %1096 = vmatprep.subr.mxu0 0.0
      %1097 = vmatpush2.msra.mxu0 0.0
      %1098 = vmatprep.subr.mxu0 0.0
      %1099 = vmatpush2.msra.mxu0 0.0
      %1100 = vmatprep.subr.mxu0 0.0
      %1101 = vmatpush2.msra.mxu0 0.0
      %1102 = vmatprep.subr.mxu0 0.0
      %1103 = vmatpush2.msra.mxu0 0.0
      %1104 = vmatprep.subr.mxu0 0.0
      %1105 = vmatpush2.msra.mxu0 0.0
      %1106 = vmatprep.subr.mxu0 0.0
      %1107 = vmatpush2.msra.mxu0 0.0
      %1108 = vmatprep.subr.mxu0 0.0
      %1109 = vmatpush2.msra.mxu0 0.0
      %1110 = vmatprep.subr.mxu0 0.0
      %1111 = vmatpush2.msra.mxu0 0.0
      %1112 = vmatprep.mubr.f32.mxu0 0.0
      %1113 = vmatmul.mubr.f32.gmra.mxu0 %v1046
      %v1114 = vpop.f32.mrf.mxu0
      %v1115 = vadd.f32 0.0, %v1114
      %v1116 = vpop.f32.mrf.mxu0
      %1117 = vdwg.mxu0
      %v1119 = vsel %vm546, %v912, 0
      %1121 = vmatprep.subr.mxu0 0.0
      %1122 = vmatpush1.msra.mxu0 0.0
      %1123 = vmatprep.subr.mxu0 0.0
      %1124 = vmatpush1.msra.mxu0 0.0
      %1125 = vmatprep.subr.mxu0 0.0
      %1126 = vmatpush1.msra.mxu0 0.0
      %1127 = vmatprep.subr.mxu0 0.0
      %1128 = vmatpush1.msra.mxu0 0.0
      %1129 = vmatprep.subr.mxu0 0.0
      %1130 = vmatpush1.msra.mxu0 0.0
      %1131 = vmatprep.subr.mxu0 0.0
      %1132 = vmatpush1.msra.mxu0 0.0
      %1133 = vmatprep.subr.mxu0 0.0
      %1134 = vmatpush1.msra.mxu0 0.0
      %1135 = vmatprep.subr.mxu0 0.0
      %1136 = vmatpush1.msra.mxu0 0.0
      %1137 = vmatprep.subr.mxu0 0.0
      %1138 = vmatpush1.msra.mxu0 0.0
      %1139 = vmatprep.subr.mxu0 0.0
      %1140 = vmatpush1.msra.mxu0 0.0
      %1141 = vmatprep.subr.mxu0 0.0
      %1142 = vmatpush1.msra.mxu0 0.0
      %1143 = vmatprep.subr.mxu0 0.0
      %1144 = vmatpush1.msra.mxu0 0.0
      %1145 = vmatprep.subr.mxu0 0.0
      %1146 = vmatpush1.msra.mxu0 0.0
      %1147 = vmatprep.subr.mxu0 0.0
      %1148 = vmatpush1.msra.mxu0 0.0
      %1149 = vmatprep.subr.mxu0 0.0
      %1150 = vmatpush1.msra.mxu0 0.0
      %1151 = vmatprep.subr.mxu0 0.0
      %1152 = vmatpush1.msra.mxu0 %v540
      %1153 = vmatprep.subr.mxu0 0.0
      %1154 = vmatpush2.msra.mxu0 0.0
      %1155 = vmatprep.subr.mxu0 0.0
      %1156 = vmatpush2.msra.mxu0 0.0
      %1157 = vmatprep.subr.mxu0 0.0
      %1158 = vmatpush2.msra.mxu0 0.0
      %1159 = vmatprep.subr.mxu0 0.0
      %1160 = vmatpush2.msra.mxu0 0.0
      %1161 = vmatprep.subr.mxu0 0.0
      %1162 = vmatpush2.msra.mxu0 0.0
      %1163 = vmatprep.subr.mxu0 0.0
      %1164 = vmatpush2.msra.mxu0 0.0
      %1165 = vmatprep.subr.mxu0 0.0
      %1166 = vmatpush2.msra.mxu0 0.0
      %1167 = vmatprep.subr.mxu0 0.0
      %1168 = vmatpush2.msra.mxu0 0.0
      %1169 = vmatprep.subr.mxu0 0.0
      %1170 = vmatpush2.msra.mxu0 0.0
      %1171 = vmatprep.subr.mxu0 0.0
      %1172 = vmatpush2.msra.mxu0 0.0
      %1173 = vmatprep.subr.mxu0 0.0
      %1174 = vmatpush2.msra.mxu0 0.0
      %1175 = vmatprep.subr.mxu0 0.0
      %1176 = vmatpush2.msra.mxu0 0.0
      %1177 = vmatprep.subr.mxu0 0.0
      %1178 = vmatpush2.msra.mxu0 0.0
      %1179 = vmatprep.subr.mxu0 0.0
      %1180 = vmatpush2.msra.mxu0 0.0
      %1181 = vmatprep.subr.mxu0 0.0
      %1182 = vmatpush2.msra.mxu0 0.0
      %1183 = vmatprep.subr.mxu0 0.0
      %1184 = vmatpush2.msra.mxu0 0.0
      %1185 = vmatprep.mubr.f32.mxu0 0.0
      %1186 = vmatmul.mubr.f32.gmra.mxu0 %v1119
      %v1187 = vpop.f32.mrf.mxu0
      %v1188 = vadd.f32 0.0, %v1187
      %v1189 = vpop.f32.mrf.mxu0
      %1190 = vdwg.mxu0
      %v1192 = vsel %vm546, %v914, 0
      %1194 = vmatprep.subr.mxu0 0.0
      %1195 = vmatpush1.msra.mxu0 0.0
      %1196 = vmatprep.subr.mxu0 0.0
      %1197 = vmatpush1.msra.mxu0 0.0
      %1198 = vmatprep.subr.mxu0 0.0
      %1199 = vmatpush1.msra.mxu0 0.0
      %1200 = vmatprep.subr.mxu0 0.0
      %1201 = vmatpush1.msra.mxu0 0.0
      %1202 = vmatprep.subr.mxu0 0.0
      %1203 = vmatpush1.msra.mxu0 0.0
      %1204 = vmatprep.subr.mxu0 0.0
      %1205 = vmatpush1.msra.mxu0 0.0
      %1206 = vmatprep.subr.mxu0 0.0
      %1207 = vmatpush1.msra.mxu0 0.0
      %1208 = vmatprep.subr.mxu0 0.0
      %1209 = vmatpush1.msra.mxu0 0.0
      %1210 = vmatprep.subr.mxu0 0.0
      %1211 = vmatpush1.msra.mxu0 0.0
      %1212 = vmatprep.subr.mxu0 0.0
      %1213 = vmatpush1.msra.mxu0 0.0
      %1214 = vmatprep.subr.mxu0 0.0
      %1215 = vmatpush1.msra.mxu0 0.0
      %1216 = vmatprep.subr.mxu0 0.0
      %1217 = vmatpush1.msra.mxu0 0.0
      %1218 = vmatprep.subr.mxu0 0.0
      %1219 = vmatpush1.msra.mxu0 0.0
      %1220 = vmatprep.subr.mxu0 0.0
      %1221 = vmatpush1.msra.mxu0 0.0
      %1222 = vmatprep.subr.mxu0 0.0
      %1223 = vmatpush1.msra.mxu0 0.0
      %1224 = vmatprep.subr.mxu0 0.0
      %1225 = vmatpush1.msra.mxu0 %v541
      %1226 = vmatprep.subr.mxu0 0.0
      %1227 = vmatpush2.msra.mxu0 0.0
      %1228 = vmatprep.subr.mxu0 0.0
      %1229 = vmatpush2.msra.mxu0 0.0
      %1230 = vmatprep.subr.mxu0 0.0
      %1231 = vmatpush2.msra.mxu0 0.0
      %1232 = vmatprep.subr.mxu0 0.0
      %1233 = vmatpush2.msra.mxu0 0.0
      %1234 = vmatprep.subr.mxu0 0.0
      %1235 = vmatpush2.msra.mxu0 0.0
      %1236 = vmatprep.subr.mxu0 0.0
      %1237 = vmatpush2.msra.mxu0 0.0
      %1238 = vmatprep.subr.mxu0 0.0
      %1239 = vmatpush2.msra.mxu0 0.0
      %1240 = vmatprep.subr.mxu0 0.0
      %1241 = vmatpush2.msra.mxu0 0.0
      %1242 = vmatprep.subr.mxu0 0.0
      %1243 = vmatpush2.msra.mxu0 0.0
      %1244 = vmatprep.subr.mxu0 0.0
      %1245 = vmatpush2.msra.mxu0 0.0
      %1246 = vmatprep.subr.mxu0 0.0
      %1247 = vmatpush2.msra.mxu0 0.0
      %1248 = vmatprep.subr.mxu0 0.0
      %1249 = vmatpush2.msra.mxu0 0.0
      %1250 = vmatprep.subr.mxu0 0.0
      %1251 = vmatpush2.msra.mxu0 0.0
      %1252 = vmatprep.subr.mxu0 0.0
      %1253 = vmatpush2.msra.mxu0 0.0
      %1254 = vmatprep.subr.mxu0 0.0
      %1255 = vmatpush2.msra.mxu0 0.0
      %1256 = vmatprep.subr.mxu0 0.0
      %1257 = vmatpush2.msra.mxu0 0.0
      %1258 = vmatprep.mubr.f32.mxu0 0.0
      %1259 = vmatmul.mubr.f32.gmra.mxu0 %v1192
      %v1260 = vpop.f32.mrf.mxu0
      %v1261 = vadd.f32 0.0, %v1260
      %v1262 = vpop.f32.mrf.mxu0
      %1263 = vdwg.mxu0
      %v1264 = vadd.f32 %v968, %v1042
      %v1265 = vadd.f32 %v969, %v1115
      %v1266 = vadd.f32 %v970, %v1188
      %v1267 = vadd.f32 %v971, %v1261
      %1268 = vst.msk [vmem:[#allocation5] sm:$0xff] %vm546, %v1264
      %1269 = vst.msk [vmem:[#allocation5 + $0x8] sm:$0xff] %vm546, %v1265
      %1270 = vst.msk [vmem:[#allocation5 + $0x10] sm:$0xff] %vm546, %v1266
      %1271 = vst.msk [vmem:[#allocation5 + $0x18] sm:$0xff] %vm546, %v1267
      %1272 = vst.msk [vmem:[#allocation3] sm:$0xff] %vm939, %v867
      %1273 = vst.msk [vmem:[#allocation3 + $0x8] sm:$0xff] %vm939, %v868
      %1274 = vst.msk [vmem:[#allocation3 + $0x10] sm:$0xff] %vm939, %v869
      %1275 = vst.msk [vmem:[#allocation3 + $0x18] sm:$0xff] %vm939, %v870
      %p1276 = scmp.eq.s32.totalorder %s21, 2
      // Predicated region
      $region37: #{relative_mha_forward.6} parent=31 // pred_check
        %p1277 = pneg %p1276
      $region38: #{relative_mha_forward.6} parent=31 // pred_check_branch
        %1279 = sbr.rel (%p1277) target = $region40
      $region39: #{relative_mha_forward.6} parent=31 // pred_region
        %v1280 = vld [vmem:[#allocation5] sm:$0xff]
        %v1281 = vld [vmem:[#allocation5 + $0x8] sm:$0xff]
        %v1282 = vld [vmem:[#allocation5 + $0x10] sm:$0xff]
        %v1283 = vld [vmem:[#allocation5 + $0x18] sm:$0xff]
        %v1284 = vld [vmem:[#allocation4] sm:$0xff]
        %v1285 = vld [vmem:[#allocation4 + $0x8] sm:$0xff]
        %v1286 = vld [vmem:[#allocation4 + $0x10] sm:$0xff]
        %v1287 = vld [vmem:[#allocation4 + $0x18] sm:$0xff]
        %1289 = vset.pattern.permute.xlu0 0
        %1290 = vperm.xlu0 %1289, %v1284
        %v1291 = vpop.permute.xlu0 %1290
        %1294 = vset.pattern.permute.xlu0 0
        %1295 = vperm.xlu0 %1294, %v1285
        %v1296 = vpop.permute.xlu0 %1295
        %1299 = vset.pattern.permute.xlu0 0
        %1300 = vperm.xlu0 %1299, %v1286
        %v1301 = vpop.permute.xlu0 %1300
        %1304 = vset.pattern.permute.xlu0 0
        %1305 = vperm.xlu0 %1304, %v1287
        %v1306 = vpop.permute.xlu0 %1305
        %v1308 = vrcp.pop %v1291
        %v1309 = vmul.f32 %v1280, %v1308
        %v1310 = vrcp.pop %v1296
        %v1311 = vmul.f32 %v1281, %v1310
        %v1312 = vrcp.pop %v1301
        %v1313 = vmul.f32 %v1282, %v1312
        %v1314 = vrcp.pop %v1306
        %v1315 = vmul.f32 %v1283, %v1314
        %1316 = vst.msk [vmem:[%s249] sm:$0xff] %vm546, %v1309
        %1318 = vrot.lane.b32.xlu0 %v1311, 8
        %v1319 = vpop.permute.xlu0 %1318
        %vm1321 = vcmask 130112
        %1322 = vst.msk [vmem:[%s249] sm:$0xff] %vm1321, %v1319
        %1324 = vrot.lane.b32.xlu0 %v1313, 16
        %v1325 = vpop.permute.xlu0 %1324
        %vm1327 = vcmask 195712
        %1328 = vst.msk [vmem:[%s249] sm:$0xff] %vm1327, %v1325
        %1330 = vrot.lane.b32.xlu0 %v1315, 24
        %v1331 = vpop.permute.xlu0 %1330
        %vm1333 = vcmask 261312
        %1334 = vst.msk [vmem:[%s249] sm:$0xff] %vm1333, %v1331
      $region40: #{relative_mha_forward.6} parent=31 // pred_fallthru
        _
      %p1335 = scmp.lt.s32.totalorder %s19, 1
      %s1336 = scalar_select %p1335, %s19, 1
      %p1337 = scmp.lt.s32.totalorder %s20, 1
      %s1338 = scalar_select %p1337, %s20, 1
      %s1339 = smul.addr %s1336, 2
      %s1340 = sadd.s32 %s1338, %s1339
      %s1341 = smul.addr %s1340, 8
      %s1342 = scalar_lea.vmem %s3, %s1341
      // Predicated region
      $region41: #{relative_mha_forward.6} parent=31 // pred_check
        %p1343 = pneg %p130
      $region42: #{relative_mha_forward.6} parent=31 // pred_check_branch
        %1345 = sbr.rel (%p1343) target = $region44
      $region43: #{relative_mha_forward.6} parent=31 // pred_region
        _
      $region44: #{relative_mha_forward.6} parent=31 // pred_fallthru
        _
    $region32: #{relative_mha_forward.6} parent=5 // pred_fallthru
      _
    %p1346 = scmp.le.s32.totalorder 2, %s9
    // Predicated region
    $region45: #{relative_mha_forward.6} parent=5 // pred_check
      %p1347 = pneg %p1346
    $region46: #{relative_mha_forward.6} parent=5 // pred_check_branch
      %1349 = sbr.rel (%p1347) target = $region48
    $region47: #{relative_mha_forward.6} parent=5 // pred_region
      %s1350 = ssub.s32 %s9, 2
      // Predicated region
      $region49: #{relative_mha_forward.6} parent=47 // pred_check
        %p1351 = pneg %p136
      $region50: #{relative_mha_forward.6} parent=47 // pred_check_branch
        %1353 = sbr.rel (%p1351) target = $region52
      $region51: #{relative_mha_forward.6} parent=47 // pred_region
        %p1354 = scmp.lt.s32.totalorder %s22, 1
        %s1355 = scalar_select %p1354, %s22, 1
        %p1356 = scmp.lt.s32.totalorder %s23, 1
        %s1357 = scalar_select %p1356, %s23, 1
        %s1358 = smul.addr %s1355, 2
        %s1359 = sadd.s32 %s1357, %s1358
        %s1360 = smul.addr %s1359, 8
        %s1361 = scalar_lea.vmem %s3, %s1360
      $region52: #{relative_mha_forward.6} parent=47 // pred_fallthru
        _
    $region48: #{relative_mha_forward.6} parent=5 // pred_fallthru
      _
  $region6: #{relative_mha_forward.6} parent=0 // loop_footer
    %s13 = sadd.s32 1, %s9
  $region7: #{relative_mha_forward.6} parent=0 // loop_footer_branch
    %8 = sbr.rel target = $region3
  $region8: #{relative_mha_forward.6} parent=0 // loop_exit
    _

</llo_original>
